<compile_context>
chip_gen: v6e
topology: v6e:2x2x1
jax: 0.10.0
libtpu: 0.0.40
codegen_flags: <defaults>
</compile_context>

<pallas_src>
import functools

import numpy as np

import jax
import jax.numpy as jnp
from jax import lax
from jax.experimental import pallas as pl
from jax.experimental.pallas import tpu as pltpu

BN_EPS = 1e-5

STAGES = (((1, 8, 3, 1, 1),), ((8, 16, 3, 1, 1),))
POOLING_CONFIGS = ((2, 2, 0),)
NUM_CLASSES = 11
SHAPE_X_L = 7          # conv0 spatial H (pad=1, stride=1 preserves it)
SHAPE_X_P = 13         # conv0 spatial W
HIDDEN = 256

# Derived fixed sizes for the chosen architecture.
C1 = 8                 # stage-0 out channels
C2 = 16                # stage-1 out channels
PH, PW = 3, 6          # spatial dims after the 2x2/2 max-pool
TO_LINEAR = C2 * PH * PW   # 288


# ------------------------------ fused kernel ------------------------------

def _fused_forward_kernel(x_ref, wb0_ref, t0t_ref, tg0_ref, bt0_ref,
                          se_ref, so_ref,
                          wb1_ref, t1t_ref, tg1_ref, bt1_ref,
                          wfc1_ref, bfc1_ref, wfc2_ref, bfc2_ref,
                          out_ref,
                          lhs0_ref, lhs1_ref, *, batch):
    """Entire Classifier2D forward in one grid-less kernel.

    Activation layouts (2-D, VMEM resident), rows are (h, b)-major:
      stage 0 : rows = h*B + b (7 blocks of B), lanes = (w, c) = 13*8  = 104
      pooled  : rows = h*B + b (3 blocks of B), lanes = (w, c) =  6*8  =  48
      stage 1 : rows = h*B + b (3 blocks of B), lanes = (w, c) =  6*16 =  96
      fc      : rows = b, lanes = hidden / classes
    """
    B = batch
    f32 = jnp.float32
    dot = functools.partial(jnp.dot, preferred_element_type=jnp.float32)
    WX = SHAPE_X_P                       # 13

    # ---------- stage 0: Conv2d(1 -> 8, 3x3, stride 1, pad 1) ----------
    # LHS rows = (h, b); three dy bands of 13 lanes each.  Horizontal padding
    # is folded into wb0, only the vertical boundary strips are zeroed.
    lhs0_ref[:, WX:2 * WX] = x_ref[...]                                 # dy=1
    lhs0_ref[0:B, 0:WX] = jnp.zeros((B, WX), f32)                       # top pad
    lhs0_ref[B:7 * B, 0:WX] = x_ref[0:6 * B, :]                         # dy=0
    lhs0_ref[0:6 * B, 2 * WX:3 * WX] = x_ref[B:7 * B, :]                # dy=2
    lhs0_ref[6 * B:7 * B, 2 * WX:3 * WX] = jnp.zeros((B, WX), f32)      # bottom pad

    y0 = dot(lhs0_ref[...], wb0_ref[...])                               # (7B, 104)

    # BatchNorm2d (training-mode batch stats) + ReLU; fused stat matmuls.
    n0 = 1.0 / float(B * SHAPE_X_L * SHAPE_X_P)
    sums0 = jnp.concatenate(
        [jnp.sum(y0, axis=0, keepdims=True),
         jnp.sum(y0 * y0, axis=0, keepdims=True)], axis=0)              # (2, 104)
    st0 = dot(sums0, t0t_ref[...])                                      # (2, 8)
    mean0 = st0[0:1] * n0
    var0 = st0[1:2] * n0 - mean0 * mean0
    inv0 = lax.rsqrt(var0 + BN_EPS)
    proj0 = dot(jnp.concatenate([inv0, mean0 * inv0], axis=0),
                tg0_ref[...])                                           # (2, 104)
    y0 = jnp.maximum(y0 * proj0[0:1] + (bt0_ref[...] - proj0[1:2]), 0.0)

    # ---------------- MaxPool2d(kernel=2, stride=2, pad=0) ----------------
    # Vertical half: three element-wise maxima of (B, 104) row blocks.
    rows = jnp.concatenate(
        [jnp.maximum(y0[0:B], y0[B:2 * B]),
         jnp.maximum(y0[2 * B:3 * B], y0[3 * B:4 * B]),
         jnp.maximum(y0[4 * B:5 * B], y0[5 * B:6 * B])], axis=0)        # (3B, 104)
    # Horizontal half: batch-independent 0/1 lane selectors (built on host).
    hp = jnp.maximum(dot(rows, se_ref[...]), dot(rows, so_ref[...]))    # (3B, 48)

    # ---------- stage 1: Conv2d(8 -> 16, 3x3, stride 1, pad 1) ----------
    L = PW * C1                                                          # 48
    lhs1_ref[:, L:2 * L] = hp                                            # dy=1
    lhs1_ref[0:B, 0:L] = jnp.zeros((B, L), f32)                          # top pad
    lhs1_ref[B:3 * B, 0:L] = hp[0:2 * B]                                 # dy=0
    lhs1_ref[0:2 * B, 2 * L:3 * L] = hp[B:3 * B]                         # dy=2
    lhs1_ref[2 * B:3 * B, 2 * L:3 * L] = jnp.zeros((B, L), f32)          # bottom pad

    y1 = dot(lhs1_ref[...], wb1_ref[...])                                # (3B, 96)

    n1 = 1.0 / float(B * PH * PW)
    sums1 = jnp.concatenate(
        [jnp.sum(y1, axis=0, keepdims=True),
         jnp.sum(y1 * y1, axis=0, keepdims=True)], axis=0)               # (2, 96)
    st1 = dot(sums1, t1t_ref[...])                                       # (2, 16)
    mean1 = st1[0:1] * n1
    var1 = st1[1:2] * n1 - mean1 * mean1
    inv1 = lax.rsqrt(var1 + BN_EPS)
    proj1 = dot(jnp.concatenate([inv1, mean1 * inv1], axis=0),
                tg1_ref[...])                                            # (2, 96)
    y1 = jnp.maximum(y1 * proj1[0:1] + (bt1_ref[...] - proj1[1:2]), 0.0)

    # ------------- flatten-free fc1 -> ReLU -> fc2 -------------
    # fc1 rows were host-permuted to (h, w, c) order, so each pooled-height
    # block contracts directly against its 96-row slab of wfc1.
    F = PW * C2                                                           # 96
    pre = (dot(y1[0:B], wfc1_ref[0:F, :])
           + dot(y1[B:2 * B], wfc1_ref[F:2 * F, :])
           + dot(y1[2 * B:3 * B], wfc1_ref[2 * F:3 * F, :])
           + bfc1_ref[...])
    h = jnp.maximum(pre, 0.0)
    out_ref[...] = dot(h, wfc2_ref[...]) + bfc2_ref[...]


# ------------------------------ forward wrapper ------------------------------

def classifier2d_forward(x, kp):
    """x: (B, 1, 7, 13).  kp: dict produced by prepare_kernel_params()."""
    B = x.shape[0]
    # (h, b)-major 2-D view of the input: rows = h*B + b, lanes = w.
    x2d = jnp.transpose(x.reshape(B, SHAPE_X_L, SHAPE_X_P),
                        (1, 0, 2)).reshape(SHAPE_X_L * B, SHAPE_X_P)

    vspec = pl.BlockSpec(memory_space=pltpu.MemorySpace.VMEM)
    kernel = functools.partial(_fused_forward_kernel, batch=B)

    return pl.pallas_call(
        kernel,
        out_shape=jax.ShapeDtypeStruct((B, NUM_CLASSES), jnp.float32),
        in_specs=[vspec] * 15,
        out_specs=vspec,
        scratch_shapes=[
            pltpu.VMEM((SHAPE_X_L * B, 3 * SHAPE_X_P), jnp.float32),   # conv0 LHS
            pltpu.VMEM((PH * B, 3 * PW * C1), jnp.float32),            # conv1 LHS
        ],
    )(x2d, kp["wb0"], kp["t0t"], kp["tg0"], kp["bt0"], kp["se"], kp["so"],
      kp["wb1"], kp["t1t"], kp["tg1"], kp["bt1"],
      kp["wfc1"], kp["bfc1"], kp["wfc2"], kp["bfc2"])


# ------------------- host-side, one-time parameter re-layout -------------------

def prepare_kernel_params(params):
    """Fold the canonical (PyTorch-layout) parameters into the matmul-friendly
    operands consumed by the fused kernel.  Runs once, eagerly, on the host."""
    Wc0, _b0, g0, be0 = (np.asarray(a, np.float32) for a in params["conv0_0"])
    Wc1, _b1, g1, be1 = (np.asarray(a, np.float32) for a in params["conv1_0"])
    fc1_w = np.asarray(params["fc1_w"], np.float32)   # (288, 256), (c,h,w) rows
    fc1_b = np.asarray(params["fc1_b"], np.float32)
    fc2_w = np.asarray(params["fc2_w"], np.float32)
    fc2_b = np.asarray(params["fc2_b"], np.float32)

    WX = SHAPE_X_P

    # conv0 (1->8): rows = (dy, w_in), cols = (w_out, c_out); horizontal
    # zero-padding folded in (weights are zero where w_in is out of range).
    wb0 = np.zeros((3 * WX, WX * C1), np.float32)
    for dy in range(3):
        for wi in range(WX):
            for wo in range(WX):
                dj = wi - wo + 1
                if 0 <= dj <= 2:
                    wb0[dy * WX + wi, wo * C1:(wo + 1) * C1] = Wc0[:, 0, dy, dj]

    # conv1 (8->16): rows = (dy, w_in, c_in), cols = (w_out, c_out).
    wb1 = np.zeros((3 * PW * C1, PW * C2), np.float32)
    for dy in range(3):
        for wi in range(PW):
            for ci in range(C1):
                for wo in range(PW):
                    dj = wi - wo + 1
                    if 0 <= dj <= 2:
                        wb1[dy * PW * C1 + wi * C1 + ci,
                            wo * C2:(wo + 1) * C2] = Wc1[:, ci, dy, dj]

    # BN helpers: lane -> per-channel projection and pre-tiled gamma/beta.
    t0t = np.zeros((WX * C1, C1), np.float32)
    tg0 = np.zeros((C1, WX * C1), np.float32)
    b0l = np.zeros((1, WX * C1), np.float32)
    for w in range(WX):
        for c in range(C1):
            t0t[w * C1 + c, c] = 1.0
            tg0[c, w * C1 + c] = g0[c]
            b0l[0, w * C1 + c] = be0[c]

    t1t = np.zeros((PW * C2, C2), np.float32)
    tg1 = np.zeros((C2, PW * C2), np.float32)
    b1l = np.zeros((1, PW * C2), np.float32)
    for w in range(PW):
        for c in range(C2):
            t1t[w * C2 + c, c] = 1.0
            tg1[c, w * C2 + c] = g1[c]
            b1l[0, w * C2 + c] = be1[c]

    # Horizontal (lane) even/odd selectors for the 2x2 max-pool (batch-free).
    se = np.zeros((WX * C1, PW * C1), np.float32)
    so = np.zeros((WX * C1, PW * C1), np.float32)
    for k in range(PW):
        for c in range(C1):
            se[(2 * k) * C1 + c, k * C1 + c] = 1.0
            so[(2 * k + 1) * C1 + c, k * C1 + c] = 1.0

    # fc1 rows permuted from the PyTorch (c, h, w) flatten to (h, w, c) so the
    # kernel contracts each pooled-height block against a contiguous row slab.
    wfc1 = np.zeros((TO_LINEAR, HIDDEN), np.float32)
    for co in range(C2):
        for ho in range(PH):
            for wo in range(PW):
                wfc1[ho * (PW * C2) + wo * C2 + co, :] = (
                    fc1_w[co * (PH * PW) + ho * PW + wo, :])

    return {
        "wb0": jnp.asarray(wb0), "t0t": jnp.asarray(t0t), "tg0": jnp.asarray(tg0),
        "bt0": jnp.asarray(b0l), "se": jnp.asarray(se), "so": jnp.asarray(so),
        "wb1": jnp.asarray(wb1), "t1t": jnp.asarray(t1t), "tg1": jnp.asarray(tg1),
        "bt1": jnp.asarray(b1l), "wfc1": jnp.asarray(wfc1),
        "bfc1": jnp.asarray(fc1_b.reshape(1, -1)),
        "wfc2": jnp.asarray(fc2_w),
        "bfc2": jnp.asarray(fc2_b.reshape(1, -1)),
    }


# ------------------------------ pure-JAX reference ------------------------------

def reference_forward(x, params):
    B = x.shape[0]
    y = x.reshape(B, 1, SHAPE_X_L, SHAPE_X_P)
    for si, stage in enumerate(STAGES):
        for li, (cin, cout, k, s, p) in enumerate(stage):
            W, b, g, bt = params[f"conv{si}_{li}"]
            y = lax.conv_general_dilated(
                y, W, (s, s), [(p, p), (p, p)],
                dimension_numbers=("NCHW", "OIHW", "NCHW"))
            y = y + b[None, :, None, None]
            mean = jnp.mean(y, axis=(0, 2, 3), keepdims=True)
            var = jnp.mean((y - mean) ** 2, axis=(0, 2, 3), keepdims=True)
            y = (y - mean) / jnp.sqrt(var + BN_EPS)
            y = y * g[None, :, None, None] + bt[None, :, None, None]
            y = jnp.maximum(y, 0.0)
        if si < len(POOLING_CONFIGS) and POOLING_CONFIGS[si] is not None:
            pk, ps, pp = POOLING_CONFIGS[si]
            y = jnp.pad(y, ((0, 0), (0, 0), (pp, pp), (pp, pp)),
                        constant_values=-jnp.inf)
            y = lax.reduce_window(y, -jnp.inf, lax.max,
                                  (1, 1, pk, pk), (1, 1, ps, ps), "VALID")
    y = y.reshape(B, -1)
    y = jnp.maximum(y @ params["fc1_w"] + params["fc1_b"], 0.0)
    return y @ params["fc2_w"] + params["fc2_b"]


# ------------------------------- parameter init -------------------------------

def _feature_output_size():
    c, h, w = 1, SHAPE_X_L, SHAPE_X_P
    for si, stage in enumerate(STAGES):
        for (cin, cout, k, s, p) in stage:
            h = (h + 2 * p - k) // s + 1
            w = (w + 2 * p - k) // s + 1
            c = cout
        if si < len(POOLING_CONFIGS) and POOLING_CONFIGS[si] is not None:
            pk, ps, pp = POOLING_CONFIGS[si]
            h = (h + 2 * pp - pk) // ps + 1
            w = (w + 2 * pp - pk) // ps + 1
    return c * h * w


def init_params(key):
    to_linear = _feature_output_size()   # mirrors self._to_linear (= 288 here)
    assert to_linear == TO_LINEAR
    params = {}
    for si, stage in enumerate(STAGES):
        for li, (cin, cout, k, s, p) in enumerate(stage):
            key, k1, k2, k3, k4 = jax.random.split(key, 5)
            W = 0.2 * jax.random.normal(k1, (cout, cin, k, k), jnp.float32)
            b = 0.05 * jax.random.normal(k2, (cout,), jnp.float32)
            g = 1.0 + 0.1 * jax.random.normal(k3, (cout,), jnp.float32)
            bt = 0.05 * jax.random.normal(k4, (cout,), jnp.float32)
            params[f"conv{si}_{li}"] = (W, b, g, bt)
    key, k1, k2 = jax.random.split(key, 3)
    # Linear weights stored already transposed to (in, out) for the matmul.
    params["fc1_w"] = 0.01 * jax.random.normal(k1, (to_linear, HIDDEN), jnp.float32)
    params["fc1_b"] = jnp.zeros((HIDDEN,), jnp.float32)
    params["fc2_w"] = 0.01 * jax.random.normal(k2, (HIDDEN, NUM_CLASSES), jnp.float32)
    params["fc2_b"] = jnp.zeros((NUM_CLASSES,), jnp.float32)
    return params


# ------------------------------------ main ------------------------------------

if __name__ == "__main__":
    key = jax.random.PRNGKey(0)
    key, kx, kp_key = jax.random.split(key, 3)

    batch = 2
    x = jax.random.normal(kx, (batch, 1, SHAPE_X_L, SHAPE_X_P), jnp.float32)
    params = init_params(kp_key)
    kparams = prepare_kernel_params(params)   # one-time host-side re-layout

    fwd = jax.jit(classifier2d_forward)
    out = jax.block_until_ready(fwd(x, kparams))

    ref = jax.block_until_ready(reference_forward(x, params))

    assert out.shape == (batch, NUM_CLASSES), f"bad output shape {out.shape}"
    if not jnp.allclose(out, ref, atol=2e-3, rtol=2e-3):
        raise AssertionError(
            f"Pallas output does not match reference; max abs err "
            f"{float(jnp.max(jnp.abs(out - ref)))}")

    print("KERNEL_OK")
</pallas_src>

<mosaic_0001>
module attributes {stable_mosaic.version = 11 : i64} {
  func.func @_fused_forward_kernel(%arg0: memref<14x13xf32, #tpu.memory_space<vmem>>, %arg1: memref<39x104xf32, #tpu.memory_space<vmem>>, %arg2: memref<104x8xf32, #tpu.memory_space<vmem>>, %arg3: memref<8x104xf32, #tpu.memory_space<vmem>>, %arg4: memref<1x104xf32, #tpu.memory_space<vmem>>, %arg5: memref<104x48xf32, #tpu.memory_space<vmem>>, %arg6: memref<104x48xf32, #tpu.memory_space<vmem>>, %arg7: memref<144x96xf32, #tpu.memory_space<vmem>>, %arg8: memref<96x16xf32, #tpu.memory_space<vmem>>, %arg9: memref<16x96xf32, #tpu.memory_space<vmem>>, %arg10: memref<1x96xf32, #tpu.memory_space<vmem>>, %arg11: memref<288x256xf32, #tpu.memory_space<vmem>>, %arg12: memref<1x256xf32, #tpu.memory_space<vmem>>, %arg13: memref<256x11xf32, #tpu.memory_space<vmem>>, %arg14: memref<1x11xf32, #tpu.memory_space<vmem>>, %arg15: memref<2x11xf32, #tpu.memory_space<vmem>>, %arg16: memref<14x39xf32, #tpu.memory_space<vmem>>, %arg17: memref<6x144xf32, #tpu.memory_space<vmem>>) attributes {dimension_semantics = [], scalar_prefetch = 0 : i64, scratch_operands = 2 : i64, tpu.core_type = #tpu.core_type<tc>} {
    %c0 = arith.constant 0 : index
    %c0_0 = arith.constant 0 : index
    %0 = vector.load %arg0[%c0, %c0_0] : memref<14x13xf32, #tpu.memory_space<vmem>>, vector<14x13xf32>
    %c0_1 = arith.constant 0 : index
    %c13 = arith.constant 13 : index
    %1 = vector.load %arg16[%c0_1, %c13] : memref<14x39xf32, #tpu.memory_space<vmem>>, vector<14x13xf32>
    tpu.vector_store %arg16[%c0_1, %c13], %0 {strides = array<i32>} : memref<14x39xf32, #tpu.memory_space<vmem>>, vector<14x13xf32>,
    %cst = arith.constant 0.000000e+00 : f32
    %2 = vector.broadcast %cst : f32 to vector<2x13xf32>
    %c0_2 = arith.constant 0 : index
    %c0_3 = arith.constant 0 : index
    %3 = vector.load %arg16[%c0_2, %c0_3] : memref<14x39xf32, #tpu.memory_space<vmem>>, vector<2x13xf32>
    tpu.vector_store %arg16[%c0_2, %c0_3], %2 {strides = array<i32>} : memref<14x39xf32, #tpu.memory_space<vmem>>, vector<2x13xf32>,
    %c0_4 = arith.constant 0 : index
    %c0_5 = arith.constant 0 : index
    %4 = vector.load %arg0[%c0_4, %c0_5] : memref<14x13xf32, #tpu.memory_space<vmem>>, vector<12x13xf32>
    %c2 = arith.constant 2 : index
    %c0_6 = arith.constant 0 : index
    %5 = vector.load %arg16[%c2, %c0_6] : memref<14x39xf32, #tpu.memory_space<vmem>>, vector<12x13xf32>
    tpu.vector_store %arg16[%c2, %c0_6], %4 {strides = array<i32>} : memref<14x39xf32, #tpu.memory_space<vmem>>, vector<12x13xf32>,
    %c2_7 = arith.constant 2 : index
    %c0_8 = arith.constant 0 : index
    %6 = vector.load %arg0[%c2_7, %c0_8] : memref<14x13xf32, #tpu.memory_space<vmem>>, vector<12x13xf32>
    %c0_9 = arith.constant 0 : index
    %c26 = arith.constant 26 : index
    %7 = vector.load %arg16[%c0_9, %c26] : memref<14x39xf32, #tpu.memory_space<vmem>>, vector<12x13xf32>
    tpu.vector_store %arg16[%c0_9, %c26], %6 {strides = array<i32>} : memref<14x39xf32, #tpu.memory_space<vmem>>, vector<12x13xf32>,
    %cst_10 = arith.constant 0.000000e+00 : f32
    %8 = vector.broadcast %cst_10 : f32 to vector<2x13xf32>
    %c12 = arith.constant 12 : index
    %c26_11 = arith.constant 26 : index
    %9 = vector.load %arg16[%c12, %c26_11] : memref<14x39xf32, #tpu.memory_space<vmem>>, vector<2x13xf32>
    tpu.vector_store %arg16[%c12, %c26_11], %8 {strides = array<i32>} : memref<14x39xf32, #tpu.memory_space<vmem>>, vector<2x13xf32>,
    %c0_12 = arith.constant 0 : index
    %c0_13 = arith.constant 0 : index
    %10 = vector.load %arg16[%c0_12, %c0_13] : memref<14x39xf32, #tpu.memory_space<vmem>>, vector<14x39xf32>
    %c0_14 = arith.constant 0 : index
    %c0_15 = arith.constant 0 : index
    %11 = vector.load %arg1[%c0_14, %c0_15] : memref<39x104xf32, #tpu.memory_space<vmem>>, vector<39x104xf32>
    %cst_16 = arith.constant dense<0.000000e+00> : vector<14x104xf32>
    %12 = tpu.matmul %10, %11, %cst_16 {dimension_numbers = #tpu.dot_dimension_numbers<[1], [0], [0], [1], [0, 0, 1, 1], [], []>} : vector<14x39xf32>, vector<39x104xf32>, vector<14x104xf32> -> vector<14x104xf32>
    %cst_17 = arith.constant dense<0.000000e+00> : vector<104xf32>
    %13 = vector.multi_reduction <add>, %12, %cst_17 [0] : vector<14x104xf32> to vector<104xf32>
    %14 = vector.shape_cast %13 : vector<104xf32> to vector<1x104xf32>
    %15 = arith.mulf %12, %12 : vector<14x104xf32>
    %cst_18 = arith.constant dense<0.000000e+00> : vector<104xf32>
    %16 = vector.multi_reduction <add>, %15, %cst_18 [0] : vector<14x104xf32> to vector<104xf32>
    %17 = vector.shape_cast %16 : vector<104xf32> to vector<1x104xf32>
    %18 = tpu.concatenate %14, %17 in 0 : vector<1x104xf32>, vector<1x104xf32> -> vector<2x104xf32>
    %c0_19 = arith.constant 0 : index
    %c0_20 = arith.constant 0 : index
    %19 = vector.load %arg2[%c0_19, %c0_20] : memref<104x8xf32, #tpu.memory_space<vmem>>, vector<104x8xf32>
    %cst_21 = arith.constant dense<0.000000e+00> : vector<2x8xf32>
    %20 = tpu.matmul %18, %19, %cst_21 {dimension_numbers = #tpu.dot_dimension_numbers<[1], [0], [0], [1], [0, 0, 1, 1], [], []>} : vector<2x104xf32>, vector<104x8xf32>, vector<2x8xf32> -> vector<2x8xf32>
    %21 = vector.extract_strided_slice %20 {offsets = [0, 0], sizes = [1, 8], strides = [1, 1]} : vector<2x8xf32> to vector<1x8xf32>
    %cst_22 = arith.constant 0.00549450563 : f32
    %22 = vector.broadcast %cst_22 : f32 to vector<1x8xf32>
    %23 = arith.mulf %21, %22 : vector<1x8xf32>
    %24 = vector.extract_strided_slice %20 {offsets = [1, 0], sizes = [1, 8], strides = [1, 1]} : vector<2x8xf32> to vector<1x8xf32>
    %cst_23 = arith.constant 0.00549450563 : f32
    %25 = vector.broadcast %cst_23 : f32 to vector<1x8xf32>
    %26 = arith.mulf %24, %25 : vector<1x8xf32>
    %27 = arith.mulf %23, %23 : vector<1x8xf32>
    %28 = arith.subf %26, %27 : vector<1x8xf32>
    %cst_24 = arith.constant 9.99999974E-6 : f32
    %29 = vector.broadcast %cst_24 : f32 to vector<1x8xf32>
    %30 = arith.addf %28, %29 : vector<1x8xf32>
    %31 = math.rsqrt %30 : vector<1x8xf32>
    %32 = arith.mulf %23, %31 : vector<1x8xf32>
    %33 = tpu.concatenate %31, %32 in 0 : vector<1x8xf32>, vector<1x8xf32> -> vector<2x8xf32>
    %c0_25 = arith.constant 0 : index
    %c0_26 = arith.constant 0 : index
    %34 = vector.load %arg3[%c0_25, %c0_26] : memref<8x104xf32, #tpu.memory_space<vmem>>, vector<8x104xf32>
    %cst_27 = arith.constant dense<0.000000e+00> : vector<2x104xf32>
    %35 = tpu.matmul %33, %34, %cst_27 {dimension_numbers = #tpu.dot_dimension_numbers<[1], [0], [0], [1], [0, 0, 1, 1], [], []>} : vector<2x8xf32>, vector<8x104xf32>, vector<2x104xf32> -> vector<2x104xf32>
    %36 = vector.extract_strided_slice %35 {offsets = [0, 0], sizes = [1, 104], strides = [1, 1]} : vector<2x104xf32> to vector<1x104xf32>
    %37 = vector.broadcast %36 : vector<1x104xf32> to vector<14x104xf32>
    %38 = arith.mulf %12, %37 : vector<14x104xf32>
    %c0_28 = arith.constant 0 : index
    %c0_29 = arith.constant 0 : index
    %39 = vector.load %arg4[%c0_28, %c0_29] : memref<1x104xf32, #tpu.memory_space<vmem>>, vector<1x104xf32>
    %40 = vector.extract_strided_slice %35 {offsets = [1, 0], sizes = [1, 104], strides = [1, 1]} : vector<2x104xf32> to vector<1x104xf32>
    %41 = arith.subf %39, %40 : vector<1x104xf32>
    %42 = vector.broadcast %41 : vector<1x104xf32> to vector<14x104xf32>
    %43 = arith.addf %38, %42 : vector<14x104xf32>
    %cst_30 = arith.constant 0.000000e+00 : f32
    %44 = vector.broadcast %cst_30 : f32 to vector<14x104xf32>
    %45 = arith.maximumf %43, %44 : vector<14x104xf32>
    %46 = vector.extract_strided_slice %45 {offsets = [0, 0], sizes = [2, 104], strides = [1, 1]} : vector<14x104xf32> to vector<2x104xf32>
    %47 = vector.extract_strided_slice %45 {offsets = [2, 0], sizes = [2, 104], strides = [1, 1]} : vector<14x104xf32> to vector<2x104xf32>
    %48 = arith.maximumf %46, %47 : vector<2x104xf32>
    %49 = vector.extract_strided_slice %45 {offsets = [4, 0], sizes = [2, 104], strides = [1, 1]} : vector<14x104xf32> to vector<2x104xf32>
    %50 = vector.extract_strided_slice %45 {offsets = [6, 0], sizes = [2, 104], strides = [1, 1]} : vector<14x104xf32> to vector<2x104xf32>
    %51 = arith.maximumf %49, %50 : vector<2x104xf32>
    %52 = vector.extract_strided_slice %45 {offsets = [8, 0], sizes = [2, 104], strides = [1, 1]} : vector<14x104xf32> to vector<2x104xf32>
    %53 = vector.extract_strided_slice %45 {offsets = [10, 0], sizes = [2, 104], strides = [1, 1]} : vector<14x104xf32> to vector<2x104xf32>
    %54 = arith.maximumf %52, %53 : vector<2x104xf32>
    %55 = tpu.concatenate %48, %51, %54 in 0 : vector<2x104xf32>, vector<2x104xf32>, vector<2x104xf32> -> vector<6x104xf32>
    %c0_31 = arith.constant 0 : index
    %c0_32 = arith.constant 0 : index
    %56 = vector.load %arg5[%c0_31, %c0_32] : memref<104x48xf32, #tpu.memory_space<vmem>>, vector<104x48xf32>
    %cst_33 = arith.constant dense<0.000000e+00> : vector<6x48xf32>
    %57 = tpu.matmul %55, %56, %cst_33 {dimension_numbers = #tpu.dot_dimension_numbers<[1], [0], [0], [1], [0, 0, 1, 1], [], []>} : vector<6x104xf32>, vector<104x48xf32>, vector<6x48xf32> -> vector<6x48xf32>
    %c0_34 = arith.constant 0 : index
    %c0_35 = arith.constant 0 : index
    %58 = vector.load %arg6[%c0_34, %c0_35] : memref<104x48xf32, #tpu.memory_space<vmem>>, vector<104x48xf32>
    %cst_36 = arith.constant dense<0.000000e+00> : vector<6x48xf32>
    %59 = tpu.matmul %55, %58, %cst_36 {dimension_numbers = #tpu.dot_dimension_numbers<[1], [0], [0], [1], [0, 0, 1, 1], [], []>} : vector<6x104xf32>, vector<104x48xf32>, vector<6x48xf32> -> vector<6x48xf32>
    %60 = arith.maximumf %57, %59 : vector<6x48xf32>
    %c0_37 = arith.constant 0 : index
    %c48 = arith.constant 48 : index
    %61 = vector.load %arg17[%c0_37, %c48] : memref<6x144xf32, #tpu.memory_space<vmem>>, vector<6x48xf32>
    tpu.vector_store %arg17[%c0_37, %c48], %60 {strides = array<i32>} : memref<6x144xf32, #tpu.memory_space<vmem>>, vector<6x48xf32>,
    %cst_38 = arith.constant 0.000000e+00 : f32
    %62 = vector.broadcast %cst_38 : f32 to vector<2x48xf32>
    %c0_39 = arith.constant 0 : index
    %c0_40 = arith.constant 0 : index
    %63 = vector.load %arg17[%c0_39, %c0_40] : memref<6x144xf32, #tpu.memory_space<vmem>>, vector<2x48xf32>
    tpu.vector_store %arg17[%c0_39, %c0_40], %62 {strides = array<i32>} : memref<6x144xf32, #tpu.memory_space<vmem>>, vector<2x48xf32>,
    %64 = vector.extract_strided_slice %60 {offsets = [0, 0], sizes = [4, 48], strides = [1, 1]} : vector<6x48xf32> to vector<4x48xf32>
    %c2_41 = arith.constant 2 : index
    %c0_42 = arith.constant 0 : index
    %65 = vector.load %arg17[%c2_41, %c0_42] : memref<6x144xf32, #tpu.memory_space<vmem>>, vector<4x48xf32>
    tpu.vector_store %arg17[%c2_41, %c0_42], %64 {strides = array<i32>} : memref<6x144xf32, #tpu.memory_space<vmem>>, vector<4x48xf32>,
    %66 = vector.extract_strided_slice %60 {offsets = [2, 0], sizes = [4, 48], strides = [1, 1]} : vector<6x48xf32> to vector<4x48xf32>
    %c0_43 = arith.constant 0 : index
    %c96 = arith.constant 96 : index
    %67 = vector.load %arg17[%c0_43, %c96] : memref<6x144xf32, #tpu.memory_space<vmem>>, vector<4x48xf32>
    tpu.vector_store %arg17[%c0_43, %c96], %66 {strides = array<i32>} : memref<6x144xf32, #tpu.memory_space<vmem>>, vector<4x48xf32>,
    %cst_44 = arith.constant 0.000000e+00 : f32
    %68 = vector.broadcast %cst_44 : f32 to vector<2x48xf32>
    %c4 = arith.constant 4 : index
    %c96_45 = arith.constant 96 : index
    %69 = vector.load %arg17[%c4, %c96_45] : memref<6x144xf32, #tpu.memory_space<vmem>>, vector<2x48xf32>
    tpu.vector_store %arg17[%c4, %c96_45], %68 {strides = array<i32>} : memref<6x144xf32, #tpu.memory_space<vmem>>, vector<2x48xf32>,
    %c0_46 = arith.constant 0 : index
    %c0_47 = arith.constant 0 : index
    %70 = vector.load %arg17[%c0_46, %c0_47] : memref<6x144xf32, #tpu.memory_space<vmem>>, vector<6x144xf32>
    %c0_48 = arith.constant 0 : index
    %c0_49 = arith.constant 0 : index
    %71 = vector.load %arg7[%c0_48, %c0_49] : memref<144x96xf32, #tpu.memory_space<vmem>>, vector<144x96xf32>
    %cst_50 = arith.constant dense<0.000000e+00> : vector<6x96xf32>
    %72 = tpu.matmul %70, %71, %cst_50 {dimension_numbers = #tpu.dot_dimension_numbers<[1], [0], [0], [1], [0, 0, 1, 1], [], []>} : vector<6x144xf32>, vector<144x96xf32>, vector<6x96xf32> -> vector<6x96xf32>
    %cst_51 = arith.constant dense<0.000000e+00> : vector<96xf32>
    %73 = vector.multi_reduction <add>, %72, %cst_51 [0] : vector<6x96xf32> to vector<96xf32>
    %74 = vector.shape_cast %73 : vector<96xf32> to vector<1x96xf32>
    %75 = arith.mulf %72, %72 : vector<6x96xf32>
    %cst_52 = arith.constant dense<0.000000e+00> : vector<96xf32>
    %76 = vector.multi_reduction <add>, %75, %cst_52 [0] : vector<6x96xf32> to vector<96xf32>
    %77 = vector.shape_cast %76 : vector<96xf32> to vector<1x96xf32>
    %78 = tpu.concatenate %74, %77 in 0 : vector<1x96xf32>, vector<1x96xf32> -> vector<2x96xf32>
    %c0_53 = arith.constant 0 : index
    %c0_54 = arith.constant 0 : index
    %79 = vector.load %arg8[%c0_53, %c0_54] : memref<96x16xf32, #tpu.memory_space<vmem>>, vector<96x16xf32>
    %cst_55 = arith.constant dense<0.000000e+00> : vector<2x16xf32>
    %80 = tpu.matmul %78, %79, %cst_55 {dimension_numbers = #tpu.dot_dimension_numbers<[1], [0], [0], [1], [0, 0, 1, 1], [], []>} : vector<2x96xf32>, vector<96x16xf32>, vector<2x16xf32> -> vector<2x16xf32>
    %81 = vector.extract_strided_slice %80 {offsets = [0, 0], sizes = [1, 16], strides = [1, 1]} : vector<2x16xf32> to vector<1x16xf32>
    %cst_56 = arith.constant 0.027777778 : f32
    %82 = vector.broadcast %cst_56 : f32 to vector<1x16xf32>
    %83 = arith.mulf %81, %82 : vector<1x16xf32>
    %84 = vector.extract_strided_slice %80 {offsets = [1, 0], sizes = [1, 16], strides = [1, 1]} : vector<2x16xf32> to vector<1x16xf32>
    %cst_57 = arith.constant 0.027777778 : f32
    %85 = vector.broadcast %cst_57 : f32 to vector<1x16xf32>
    %86 = arith.mulf %84, %85 : vector<1x16xf32>
    %87 = arith.mulf %83, %83 : vector<1x16xf32>
    %88 = arith.subf %86, %87 : vector<1x16xf32>
    %cst_58 = arith.constant 9.99999974E-6 : f32
    %89 = vector.broadcast %cst_58 : f32 to vector<1x16xf32>
    %90 = arith.addf %88, %89 : vector<1x16xf32>
    %91 = math.rsqrt %90 : vector<1x16xf32>
    %92 = arith.mulf %83, %91 : vector<1x16xf32>
    %93 = tpu.concatenate %91, %92 in 0 : vector<1x16xf32>, vector<1x16xf32> -> vector<2x16xf32>
    %c0_59 = arith.constant 0 : index
    %c0_60 = arith.constant 0 : index
    %94 = vector.load %arg9[%c0_59, %c0_60] : memref<16x96xf32, #tpu.memory_space<vmem>>, vector<16x96xf32>
    %cst_61 = arith.constant dense<0.000000e+00> : vector<2x96xf32>
    %95 = tpu.matmul %93, %94, %cst_61 {dimension_numbers = #tpu.dot_dimension_numbers<[1], [0], [0], [1], [0, 0, 1, 1], [], []>} : vector<2x16xf32>, vector<16x96xf32>, vector<2x96xf32> -> vector<2x96xf32>
    %96 = vector.extract_strided_slice %95 {offsets = [0, 0], sizes = [1, 96], strides = [1, 1]} : vector<2x96xf32> to vector<1x96xf32>
    %97 = vector.broadcast %96 : vector<1x96xf32> to vector<6x96xf32>
    %98 = arith.mulf %72, %97 : vector<6x96xf32>
    %c0_62 = arith.constant 0 : index
    %c0_63 = arith.constant 0 : index
    %99 = vector.load %arg10[%c0_62, %c0_63] : memref<1x96xf32, #tpu.memory_space<vmem>>, vector<1x96xf32>
    %100 = vector.extract_strided_slice %95 {offsets = [1, 0], sizes = [1, 96], strides = [1, 1]} : vector<2x96xf32> to vector<1x96xf32>
    %101 = arith.subf %99, %100 : vector<1x96xf32>
    %102 = vector.broadcast %101 : vector<1x96xf32> to vector<6x96xf32>
    %103 = arith.addf %98, %102 : vector<6x96xf32>
    %cst_64 = arith.constant 0.000000e+00 : f32
    %104 = vector.broadcast %cst_64 : f32 to vector<6x96xf32>
    %105 = arith.maximumf %103, %104 : vector<6x96xf32>
    %106 = vector.extract_strided_slice %105 {offsets = [0, 0], sizes = [2, 96], strides = [1, 1]} : vector<6x96xf32> to vector<2x96xf32>
    %c0_65 = arith.constant 0 : index
    %c0_66 = arith.constant 0 : index
    %107 = vector.load %arg11[%c0_65, %c0_66] : memref<288x256xf32, #tpu.memory_space<vmem>>, vector<96x256xf32>
    %cst_67 = arith.constant dense<0.000000e+00> : vector<2x256xf32>
    %108 = tpu.matmul %106, %107, %cst_67 {dimension_numbers = #tpu.dot_dimension_numbers<[1], [0], [0], [1], [0, 0, 1, 1], [], []>} : vector<2x96xf32>, vector<96x256xf32>, vector<2x256xf32> -> vector<2x256xf32>
    %109 = vector.extract_strided_slice %105 {offsets = [2, 0], sizes = [2, 96], strides = [1, 1]} : vector<6x96xf32> to vector<2x96xf32>
    %c96_68 = arith.constant 96 : index
    %c0_69 = arith.constant 0 : index
    %110 = vector.load %arg11[%c96_68, %c0_69] : memref<288x256xf32, #tpu.memory_space<vmem>>, vector<96x256xf32>
    %cst_70 = arith.constant dense<0.000000e+00> : vector<2x256xf32>
    %111 = tpu.matmul %109, %110, %cst_70 {dimension_numbers = #tpu.dot_dimension_numbers<[1], [0], [0], [1], [0, 0, 1, 1], [], []>} : vector<2x96xf32>, vector<96x256xf32>, vector<2x256xf32> -> vector<2x256xf32>
    %112 = arith.addf %108, %111 : vector<2x256xf32>
    %113 = vector.extract_strided_slice %105 {offsets = [4, 0], sizes = [2, 96], strides = [1, 1]} : vector<6x96xf32> to vector<2x96xf32>
    %c192 = arith.constant 192 : index
    %c0_71 = arith.constant 0 : index
    %114 = vector.load %arg11[%c192, %c0_71] : memref<288x256xf32, #tpu.memory_space<vmem>>, vector<96x256xf32>
    %cst_72 = arith.constant dense<0.000000e+00> : vector<2x256xf32>
    %115 = tpu.matmul %113, %114, %cst_72 {dimension_numbers = #tpu.dot_dimension_numbers<[1], [0], [0], [1], [0, 0, 1, 1], [], []>} : vector<2x96xf32>, vector<96x256xf32>, vector<2x256xf32> -> vector<2x256xf32>
    %116 = arith.addf %112, %115 : vector<2x256xf32>
    %c0_73 = arith.constant 0 : index
    %c0_74 = arith.constant 0 : index
    %117 = vector.load %arg12[%c0_73, %c0_74] : memref<1x256xf32, #tpu.memory_space<vmem>>, vector<1x256xf32>
    %118 = vector.broadcast %117 : vector<1x256xf32> to vector<2x256xf32>
    %119 = arith.addf %116, %118 : vector<2x256xf32>
    %cst_75 = arith.constant 0.000000e+00 : f32
    %120 = vector.broadcast %cst_75 : f32 to vector<2x256xf32>
    %121 = arith.maximumf %119, %120 : vector<2x256xf32>
    %c0_76 = arith.constant 0 : index
    %c0_77 = arith.constant 0 : index
    %122 = vector.load %arg13[%c0_76, %c0_77] : memref<256x11xf32, #tpu.memory_space<vmem>>, vector<256x11xf32>
    %cst_78 = arith.constant dense<0.000000e+00> : vector<2x11xf32>
    %123 = tpu.matmul %121, %122, %cst_78 {dimension_numbers = #tpu.dot_dimension_numbers<[1], [0], [0], [1], [0, 0, 1, 1], [], []>} : vector<2x256xf32>, vector<256x11xf32>, vector<2x11xf32> -> vector<2x11xf32>
    %c0_79 = arith.constant 0 : index
    %c0_80 = arith.constant 0 : index
    %124 = vector.load %arg14[%c0_79, %c0_80] : memref<1x11xf32, #tpu.memory_space<vmem>>, vector<1x11xf32>
    %125 = vector.broadcast %124 : vector<1x11xf32> to vector<2x11xf32>
    %126 = arith.addf %123, %125 : vector<2x11xf32>
    %c0_81 = arith.constant 0 : index
    %c0_82 = arith.constant 0 : index
    %127 = vector.load %arg15[%c0_81, %c0_82] : memref<2x11xf32, #tpu.memory_space<vmem>>, vector<2x11xf32>
    tpu.vector_store %arg15[%c0_81, %c0_82], %126 {strides = array<i32>} : memref<2x11xf32, #tpu.memory_space<vmem>>, vector<2x11xf32>,
    return
  }
}

</mosaic_0001>

<llo_original>
// kernel: classifier2d_forward.1
$region0: #{classifier2d_forward.1}
  #allocation0 [shape = 'u32[]', space=smem, size = 0x4, offset = 0x4, fixed_abs, tag = 'smem constant byte address 0x4 - core index']
  #allocation1 [shape = 'u32[144,128]{1,0:T(1,128)}', space=vmem, size = 0x12000, scoped, tag = 'internal scratch']
  #allocation2 [shape = 'f32[14,39]{1,0:T(8,128)}', space=vmem, size = 0x2000, scoped, tag = 'scratch operand']
  #allocation3 [shape = 'f32[6,144]{1,0:T(8,128)}', space=vmem, size = 0x2000, scoped, tag = 'scratch operand']
  %s0 = inlined_call_operand.vmem [shape: f32[14,13], index: 0, kind: input, shape index: {}]
  %s1 = inlined_call_operand.vmem [shape: f32[39,104], index: 1, kind: input, shape index: {}]
  %s2 = inlined_call_operand.vmem [shape: f32[104,8], index: 2, kind: input, shape index: {}]
  %s3 = inlined_call_operand.vmem [shape: f32[8,104], index: 3, kind: input, shape index: {}]
  %s4 = inlined_call_operand.vmem [shape: f32[1,104], index: 4, kind: input, shape index: {}]
  %s5 = inlined_call_operand.vmem [shape: f32[104,48], index: 5, kind: input, shape index: {}]
  %s6 = inlined_call_operand.vmem [shape: f32[104,48], index: 6, kind: input, shape index: {}]
  %s7 = inlined_call_operand.vmem [shape: f32[144,96], index: 7, kind: input, shape index: {}]
  %s8 = inlined_call_operand.vmem [shape: f32[96,16], index: 8, kind: input, shape index: {}]
  %s9 = inlined_call_operand.vmem [shape: f32[16,96], index: 9, kind: input, shape index: {}]
  %s10 = inlined_call_operand.vmem [shape: f32[1,96], index: 10, kind: input, shape index: {}]
  %s11 = inlined_call_operand.vmem [shape: f32[288,256], index: 11, kind: input, shape index: {}]
  %s12 = inlined_call_operand.vmem [shape: f32[1,256], index: 12, kind: input, shape index: {}]
  %s13 = inlined_call_operand.vmem [shape: f32[256,11], index: 13, kind: input, shape index: {}]
  %s14 = inlined_call_operand.vmem [shape: f32[1,11], index: 14, kind: input, shape index: {}]
  %s15 = inlined_call_operand.hbm [shape: f32[2,11], index: 15, kind: output, shape index: {}]
  %s16 = sld [smem:[#allocation0]]
  $region70: #{classifier2d_forward.1} parent=0
    _
  %s18 = ssub.s32 1, %s16
  %s19 = scalar_select 0, %s18, %s16
  $region1: #{classifier2d_forward.1} parent=0
    #allocation4 [shape = 'u8[1024]{0}', space=vmem, size = 0x400, scoped, tag = 'output window, operand 0, single buffered']
    #allocation5 [shape = 's32[1]{0}', space=sflag, size = 0x4, scoped, tag = 'scoped memory for classifier2d_forward.1']
    %20 = vsyncpa [#allocation5], 0
    // Predicated region
    $region2: #{classifier2d_forward.1} parent=1 // pred_check
      _
    $region3: #{classifier2d_forward.1} parent=1 // pred_check_branch
      %22 = sbr.rel (0) target = $region5
    $region4: #{classifier2d_forward.1} parent=1 // pred_region
      _
    $region5: #{classifier2d_forward.1} parent=1 // pred_fallthru
      _
    // Predicated region
    $region6: #{classifier2d_forward.1} parent=1 // pred_check
      _
    $region7: #{classifier2d_forward.1} parent=1 // pred_check_branch
      %24 = sbr.rel (0) target = $region9
    $region8: #{classifier2d_forward.1} parent=1 // pred_region
      _
    $region9: #{classifier2d_forward.1} parent=1 // pred_fallthru
      _
    // Predicated region
    $region10: #{classifier2d_forward.1} parent=1 // pred_check
      _
    $region11: #{classifier2d_forward.1} parent=1 // pred_check_branch
      %26 = sbr.rel (0) target = $region13
    $region12: #{classifier2d_forward.1} parent=1 // pred_region
      _
    $region13: #{classifier2d_forward.1} parent=1 // pred_fallthru
      _
    // Predicated region
    $region14: #{classifier2d_forward.1} parent=1 // pred_check
      _
    $region15: #{classifier2d_forward.1} parent=1 // pred_check_branch
      %28 = sbr.rel (0) target = $region17
    $region16: #{classifier2d_forward.1} parent=1 // pred_region
      _
    $region17: #{classifier2d_forward.1} parent=1 // pred_fallthru
      _
    // Predicated region
    $region18: #{classifier2d_forward.1} parent=1 // pred_check
      _
    $region19: #{classifier2d_forward.1} parent=1 // pred_check_branch
      %30 = sbr.rel (0) target = $region21
    $region20: #{classifier2d_forward.1} parent=1 // pred_region
      _
    $region21: #{classifier2d_forward.1} parent=1 // pred_fallthru
      _
    // Predicated region
    $region22: #{classifier2d_forward.1} parent=1 // pred_check
      _
    $region23: #{classifier2d_forward.1} parent=1 // pred_check_branch
      %32 = sbr.rel (0) target = $region25
    $region24: #{classifier2d_forward.1} parent=1 // pred_region
      _
    $region25: #{classifier2d_forward.1} parent=1 // pred_fallthru
      _
    // Predicated region
    $region26: #{classifier2d_forward.1} parent=1 // pred_check
      _
    $region27: #{classifier2d_forward.1} parent=1 // pred_check_branch
      %34 = sbr.rel (0) target = $region29
    $region28: #{classifier2d_forward.1} parent=1 // pred_region
      _
    $region29: #{classifier2d_forward.1} parent=1 // pred_fallthru
      _
    // Predicated region
    $region30: #{classifier2d_forward.1} parent=1 // pred_check
      _
    $region31: #{classifier2d_forward.1} parent=1 // pred_check_branch
      %36 = sbr.rel (0) target = $region33
    $region32: #{classifier2d_forward.1} parent=1 // pred_region
      _
    $region33: #{classifier2d_forward.1} parent=1 // pred_fallthru
      _
    // Predicated region
    $region34: #{classifier2d_forward.1} parent=1 // pred_check
      _
    $region35: #{classifier2d_forward.1} parent=1 // pred_check_branch
      %38 = sbr.rel (0) target = $region37
    $region36: #{classifier2d_forward.1} parent=1 // pred_region
      _
    $region37: #{classifier2d_forward.1} parent=1 // pred_fallthru
      _
    // Predicated region
    $region38: #{classifier2d_forward.1} parent=1 // pred_check
      _
    $region39: #{classifier2d_forward.1} parent=1 // pred_check_branch
      %40 = sbr.rel (0) target = $region41
    $region40: #{classifier2d_forward.1} parent=1 // pred_region
      _
    $region41: #{classifier2d_forward.1} parent=1 // pred_fallthru
      _
    // Predicated region
    $region42: #{classifier2d_forward.1} parent=1 // pred_check
      _
    $region43: #{classifier2d_forward.1} parent=1 // pred_check_branch
      %42 = sbr.rel (0) target = $region45
    $region44: #{classifier2d_forward.1} parent=1 // pred_region
      _
    $region45: #{classifier2d_forward.1} parent=1 // pred_fallthru
      _
    // Predicated region
    $region46: #{classifier2d_forward.1} parent=1 // pred_check
      _
    $region47: #{classifier2d_forward.1} parent=1 // pred_check_branch
      %44 = sbr.rel (0) target = $region49
    $region48: #{classifier2d_forward.1} parent=1 // pred_region
      _
    $region49: #{classifier2d_forward.1} parent=1 // pred_fallthru
      _
    // Predicated region
    $region50: #{classifier2d_forward.1} parent=1 // pred_check
      _
    $region51: #{classifier2d_forward.1} parent=1 // pred_check_branch
      %46 = sbr.rel (0) target = $region53
    $region52: #{classifier2d_forward.1} parent=1 // pred_region
      _
    $region53: #{classifier2d_forward.1} parent=1 // pred_fallthru
      _
    // Predicated region
    $region54: #{classifier2d_forward.1} parent=1 // pred_check
      _
    $region55: #{classifier2d_forward.1} parent=1 // pred_check_branch
      %48 = sbr.rel (0) target = $region57
    $region56: #{classifier2d_forward.1} parent=1 // pred_region
      _
    $region57: #{classifier2d_forward.1} parent=1 // pred_fallthru
      _
    // Predicated region
    $region58: #{classifier2d_forward.1} parent=1 // pred_check
      _
    $region59: #{classifier2d_forward.1} parent=1 // pred_check_branch
      %50 = sbr.rel (0) target = $region61
    $region60: #{classifier2d_forward.1} parent=1 // pred_region
      _
    $region61: #{classifier2d_forward.1} parent=1 // pred_fallthru
      _
    %v51 = vld [vmem:[%s0] sm:$0xff]
    %v52 = vld [vmem:[%s0 + $0x8] sm:$0x3f]
    %55 = vrot.lane.b32.xlu0 %v51, 13
    %v56 = vpop.permute.xlu0 %55
    %57 = vrot.lane.b32.xlu0 %v52, 13
    %v58 = vpop.permute.xlu0 %57
    %vm61 = vcmask 212072
    %62 = vst.msk [vmem:[#allocation2] sm:$0xff] %vm61, %v56
    %vm63 = vcmask 210024
    %64 = vst.msk [vmem:[#allocation2 + $0x8] sm:$0x3f] %vm63, %v58
    %vm65 = vcmask 99328
    %66 = vst.msk [vmem:[#allocation2] sm:$0x3] %vm65, 0.0
    %v67 = vld [vmem:[%s0] sm:$0xff]
    %v68 = vld [vmem:[%s0 + $0x8] sm:$0xf]
    %vm69 = vcmask 105472
    %70 = vst.msk [vmem:[#allocation2 + $0x2] sm:$0xff] %vm69, %v67
    %vm71 = vcmask 101376
    %72 = vst.msk [vmem:[#allocation2 + $0xa] sm:$0xf] %vm71, %v68
    %v73 = vld [vmem:[%s0 + $0x2] sm:$0xff]
    %v74 = vld [vmem:[%s0 + $0xa] sm:$0xf]
    %77 = vrot.lane.b32.xlu0 %v73, 26
    %v78 = vpop.permute.xlu0 %77
    %79 = vrot.lane.b32.xlu0 %v74, 26
    %v80 = vpop.permute.xlu0 %79
    %vm83 = vcmask 318672
    %84 = vst.msk [vmem:[#allocation2] sm:$0xff] %vm83, %v78
    %vm85 = vcmask 314576
    %86 = vst.msk [vmem:[#allocation2 + $0x8] sm:$0xf] %vm85, %v80
    %vm87 = vcmask 312528
    %88 = vst.msk [vmem:[#allocation2 + $0xc] sm:$0x3] %vm87, 0.0
    %v89 = vld [vmem:[#allocation2] sm:$0xff]
    %v90 = vld [vmem:[#allocation2 + $0x8] sm:$0x3f]
    %v91 = vld [vmem:[%s1] sm:$0xff]
    %v92 = vld [vmem:[%s1 + $0x8] sm:$0xff]
    %v93 = vld [vmem:[%s1 + $0x10] sm:$0xff]
    %v94 = vld [vmem:[%s1 + $0x18] sm:$0xff]
    %v95 = vld [vmem:[%s1 + $0x20] sm:$0x7f]
    %vm96 = vcmask 318464
    %v98 = vsel %vm96, %v89, 0
    %v101 = vsel %vm96, %v90, 0
    %vm103 = vcmask 1046528
    %v105 = vsel %vm103, %v95, 0
    %107 = vmatprep.subr.mxu0 0.0
    %108 = vmatpush1.msra.mxu0 0.0
    %109 = vmatprep.subr.mxu0 0.0
    %110 = vmatpush1.msra.mxu0 0.0
    %111 = vmatprep.subr.mxu0 0.0
    %112 = vmatpush1.msra.mxu0 0.0
    %113 = vmatprep.subr.mxu0 0.0
    %114 = vmatpush1.msra.mxu0 0.0
    %115 = vmatprep.subr.mxu0 0.0
    %116 = vmatpush1.msra.mxu0 0.0
    %117 = vmatprep.subr.mxu0 0.0
    %118 = vmatpush1.msra.mxu0 0.0
    %119 = vmatprep.subr.mxu0 0.0
    %120 = vmatpush1.msra.mxu0 0.0
    %121 = vmatprep.subr.mxu0 0.0
    %122 = vmatpush1.msra.mxu0 0.0
    %123 = vmatprep.subr.mxu0 0.0
    %124 = vmatpush1.msra.mxu0 0.0
    %125 = vmatprep.subr.mxu0 0.0
    %126 = vmatpush1.msra.mxu0 0.0
    %127 = vmatprep.subr.mxu0 0.0
    %128 = vmatpush1.msra.mxu0 0.0
    %129 = vmatprep.subr.mxu0 0.0
    %130 = vmatpush1.msra.mxu0 %v105
    %131 = vmatprep.subr.mxu0 0.0
    %132 = vmatpush1.msra.mxu0 %v94
    %133 = vmatprep.subr.mxu0 0.0
    %134 = vmatpush1.msra.mxu0 %v93
    %135 = vmatprep.subr.mxu0 0.0
    %136 = vmatpush1.msra.mxu0 %v92
    %137 = vmatprep.subr.mxu0 0.0
    %138 = vmatpush1.msra.mxu0 %v91
    %139 = vmatprep.subr.mxu0 0.0
    %140 = vmatpush2.msra.mxu0 0.0
    %141 = vmatprep.subr.mxu0 0.0
    %142 = vmatpush2.msra.mxu0 0.0
    %143 = vmatprep.subr.mxu0 0.0
    %144 = vmatpush2.msra.mxu0 0.0
    %145 = vmatprep.subr.mxu0 0.0
    %146 = vmatpush2.msra.mxu0 0.0
    %147 = vmatprep.subr.mxu0 0.0
    %148 = vmatpush2.msra.mxu0 0.0
    %149 = vmatprep.subr.mxu0 0.0
    %150 = vmatpush2.msra.mxu0 0.0
    %151 = vmatprep.subr.mxu0 0.0
    %152 = vmatpush2.msra.mxu0 0.0
    %153 = vmatprep.subr.mxu0 0.0
    %154 = vmatpush2.msra.mxu0 0.0
    %155 = vmatprep.subr.mxu0 0.0
    %156 = vmatpush2.msra.mxu0 0.0
    %157 = vmatprep.subr.mxu0 0.0
    %158 = vmatpush2.msra.mxu0 0.0
    %159 = vmatprep.subr.mxu0 0.0
    %160 = vmatpush2.msra.mxu0 0.0
    %161 = vmatprep.subr.mxu0 0.0
    %162 = vmatpush2.msra.mxu0 0.0
    %163 = vmatprep.subr.mxu0 0.0
    %164 = vmatpush2.msra.mxu0 0.0
    %165 = vmatprep.subr.mxu0 0.0
    %166 = vmatpush2.msra.mxu0 0.0
    %167 = vmatprep.subr.mxu0 0.0
    %168 = vmatpush2.msra.mxu0 0.0
    %169 = vmatprep.subr.mxu0 0.0
    %170 = vmatpush2.msra.mxu0 0.0
    %171 = vmatprep.mubr.f32.mxu0 0.0
    %172 = vmatmul.mubr.f32.gmra.mxu0 %v98
    %v173 = vpop.f32.mrf.mxu0
    %v174 = vadd.f32 0.0, %v173
    %v175 = vpop.f32.mrf.mxu0
    %176 = vmatprep.mubr.f32.mxu0 0.0
    %177 = vmatmul.mubr.f32.gmra.mxu0 %v101
    %v178 = vpop.f32.mrf.mxu0
    %v179 = vadd.f32 0.0, %v178
    %v180 = vpop.f32.mrf.mxu0
    %181 = vdwg.mxu0
    %vm182 = vcmask 850944
    %v183 = vsel %vm182, %v174, 0.0
    %vm184 = vcmask 848896
    %v185 = vsel %vm184, %v179, 0.0
    %v186 = vadd.f32 %v183, %v185
    %v187 = vrot.slane %v186, 4
    %v188 = vadd.f32 %v186, %v187
    %v189 = vrot.slane %v188, 2
    %v190 = vadd.f32 %v188, %v189
    %v191 = vrot.slane %v190, 1
    %v192 = vadd.f32 %v190, %v191
    %v193 = vmul.f32 %v174, %v174
    %v194 = vmul.f32 %v179, %v179
    %v195 = vsel %vm182, %v193, 0.0
    %v196 = vsel %vm184, %v194, 0.0
    %v197 = vadd.f32 %v195, %v196
    %v198 = vrot.slane %v197, 4
    %v199 = vadd.f32 %v197, %v198
    %v200 = vrot.slane %v199, 2
    %v201 = vadd.f32 %v199, %v200
    %v202 = vrot.slane %v201, 1
    %v203 = vadd.f32 %v201, %v202
    %vm204 = vcmask 1040384
    %v205 = vsel %vm204, %v192, %v203
    %v206 = vld [vmem:[%s2] sm:$0xff]
    %v207 = vld [vmem:[%s2 + $0x8] sm:$0xff]
    %v208 = vld [vmem:[%s2 + $0x10] sm:$0xff]
    %v209 = vld [vmem:[%s2 + $0x18] sm:$0xff]
    %v210 = vld [vmem:[%s2 + $0x20] sm:$0xff]
    %v211 = vld [vmem:[%s2 + $0x28] sm:$0xff]
    %v212 = vld [vmem:[%s2 + $0x30] sm:$0xff]
    %v213 = vld [vmem:[%s2 + $0x38] sm:$0xff]
    %v214 = vld [vmem:[%s2 + $0x40] sm:$0xff]
    %v215 = vld [vmem:[%s2 + $0x48] sm:$0xff]
    %v216 = vld [vmem:[%s2 + $0x50] sm:$0xff]
    %v217 = vld [vmem:[%s2 + $0x58] sm:$0xff]
    %v218 = vld [vmem:[%s2 + $0x60] sm:$0xff]
    %v220 = vsel %vm182, %v205, 0
    %222 = vmatprep.subr.mxu0 0.0
    %223 = vmatpush1.msra.mxu0 0.0
    %224 = vmatprep.subr.mxu0 0.0
    %225 = vmatpush1.msra.mxu0 0.0
    %226 = vmatprep.subr.mxu0 0.0
    %227 = vmatpush1.msra.mxu0 0.0
    %228 = vmatprep.subr.mxu0 0.0
    %229 = vmatpush1.msra.mxu0 %v218
    %230 = vmatprep.subr.mxu0 0.0
    %231 = vmatpush1.msra.mxu0 %v217
    %232 = vmatprep.subr.mxu0 0.0
    %233 = vmatpush1.msra.mxu0 %v216
    %234 = vmatprep.subr.mxu0 0.0
    %235 = vmatpush1.msra.mxu0 %v215
    %236 = vmatprep.subr.mxu0 0.0
    %237 = vmatpush1.msra.mxu0 %v214
    %238 = vmatprep.subr.mxu0 0.0
    %239 = vmatpush1.msra.mxu0 %v213
    %240 = vmatprep.subr.mxu0 0.0
    %241 = vmatpush1.msra.mxu0 %v212
    %242 = vmatprep.subr.mxu0 0.0
    %243 = vmatpush1.msra.mxu0 %v211
    %244 = vmatprep.subr.mxu0 0.0
    %245 = vmatpush1.msra.mxu0 %v210
    %246 = vmatprep.subr.mxu0 0.0
    %247 = vmatpush1.msra.mxu0 %v209
    %248 = vmatprep.subr.mxu0 0.0
    %249 = vmatpush1.msra.mxu0 %v208
    %250 = vmatprep.subr.mxu0 0.0
    %251 = vmatpush1.msra.mxu0 %v207
    %252 = vmatprep.subr.mxu0 0.0
    %253 = vmatpush1.msra.mxu0 %v206
    %254 = vmatprep.subr.mxu0 0.0
    %255 = vmatpush2.msra.mxu0 0.0
    %256 = vmatprep.subr.mxu0 0.0
    %257 = vmatpush2.msra.mxu0 0.0
    %258 = vmatprep.subr.mxu0 0.0
    %259 = vmatpush2.msra.mxu0 0.0
    %260 = vmatprep.subr.mxu0 0.0
    %261 = vmatpush2.msra.mxu0 0.0
    %262 = vmatprep.subr.mxu0 0.0
    %263 = vmatpush2.msra.mxu0 0.0
    %264 = vmatprep.subr.mxu0 0.0
    %265 = vmatpush2.msra.mxu0 0.0
    %266 = vmatprep.subr.mxu0 0.0
    %267 = vmatpush2.msra.mxu0 0.0
    %268 = vmatprep.subr.mxu0 0.0
    %269 = vmatpush2.msra.mxu0 0.0
    %270 = vmatprep.subr.mxu0 0.0
    %271 = vmatpush2.msra.mxu0 0.0
    %272 = vmatprep.subr.mxu0 0.0
    %273 = vmatpush2.msra.mxu0 0.0
    %274 = vmatprep.subr.mxu0 0.0
    %275 = vmatpush2.msra.mxu0 0.0
    %276 = vmatprep.subr.mxu0 0.0
    %277 = vmatpush2.msra.mxu0 0.0
    %278 = vmatprep.subr.mxu0 0.0
    %279 = vmatpush2.msra.mxu0 0.0
    %280 = vmatprep.subr.mxu0 0.0
    %281 = vmatpush2.msra.mxu0 0.0
    %282 = vmatprep.subr.mxu0 0.0
    %283 = vmatpush2.msra.mxu0 0.0
    %284 = vmatprep.subr.mxu0 0.0
    %285 = vmatpush2.msra.mxu0 0.0
    %286 = vmatprep.mubr.f32.mxu0 0.0
    %287 = vmatmul.mubr.f32.gmra.mxu0 %v220
    %v288 = vpop.f32.mrf.mxu0
    %v289 = vadd.f32 0.0, %v288
    %v290 = vpop.f32.mrf.mxu0
    %291 = vdwg.mxu0
    %v292 = vmul.f32 %v289, 0.0054945056
    %v293 = vmul.f32 %v292, %v292
    %v295 = vrot.slane %v293, 7
    %v297 = vsub.f32 %v292, %v295
    %v298 = vadd.f32 %v297, 1e-05
    %v299 = vrsqrt.pop %v298
    %v301 = vrot.slane %v299, 1
    %v303 = vmul.f32 %v292, %v301
    %v305 = vrot.slane %v303, 7
    %v307 = vsel %vm204, %v301, %v305
    %v308 = vld [vmem:[%s3] sm:$0xff]
    %vm309 = vcmask 64512
    %v311 = vsel %vm309, %v307, 0
    %313 = vmatprep.subr.mxu0 0.0
    %314 = vmatpush1.msra.mxu0 0.0
    %315 = vmatprep.subr.mxu0 0.0
    %316 = vmatpush1.msra.mxu0 0.0
    %317 = vmatprep.subr.mxu0 0.0
    %318 = vmatpush1.msra.mxu0 0.0
    %319 = vmatprep.subr.mxu0 0.0
    %320 = vmatpush1.msra.mxu0 0.0
    %321 = vmatprep.subr.mxu0 0.0
    %322 = vmatpush1.msra.mxu0 0.0
    %323 = vmatprep.subr.mxu0 0.0
    %324 = vmatpush1.msra.mxu0 0.0
    %325 = vmatprep.subr.mxu0 0.0
    %326 = vmatpush1.msra.mxu0 0.0
    %327 = vmatprep.subr.mxu0 0.0
    %328 = vmatpush1.msra.mxu0 0.0
    %329 = vmatprep.subr.mxu0 0.0
    %330 = vmatpush1.msra.mxu0 0.0
    %331 = vmatprep.subr.mxu0 0.0
    %332 = vmatpush1.msra.mxu0 0.0
    %333 = vmatprep.subr.mxu0 0.0
    %334 = vmatpush1.msra.mxu0 0.0
    %335 = vmatprep.subr.mxu0 0.0
    %336 = vmatpush1.msra.mxu0 0.0
    %337 = vmatprep.subr.mxu0 0.0
    %338 = vmatpush1.msra.mxu0 0.0
    %339 = vmatprep.subr.mxu0 0.0
    %340 = vmatpush1.msra.mxu0 0.0
    %341 = vmatprep.subr.mxu0 0.0
    %342 = vmatpush1.msra.mxu0 0.0
    %343 = vmatprep.subr.mxu0 0.0
    %344 = vmatpush1.msra.mxu0 %v308
    %345 = vmatprep.subr.mxu0 0.0
    %346 = vmatpush2.msra.mxu0 0.0
    %347 = vmatprep.subr.mxu0 0.0
    %348 = vmatpush2.msra.mxu0 0.0
    %349 = vmatprep.subr.mxu0 0.0
    %350 = vmatpush2.msra.mxu0 0.0
    %351 = vmatprep.subr.mxu0 0.0
    %352 = vmatpush2.msra.mxu0 0.0
    %353 = vmatprep.subr.mxu0 0.0
    %354 = vmatpush2.msra.mxu0 0.0
    %355 = vmatprep.subr.mxu0 0.0
    %356 = vmatpush2.msra.mxu0 0.0
    %357 = vmatprep.subr.mxu0 0.0
    %358 = vmatpush2.msra.mxu0 0.0
    %359 = vmatprep.subr.mxu0 0.0
    %360 = vmatpush2.msra.mxu0 0.0
    %361 = vmatprep.subr.mxu0 0.0
    %362 = vmatpush2.msra.mxu0 0.0
    %363 = vmatprep.subr.mxu0 0.0
    %364 = vmatpush2.msra.mxu0 0.0
    %365 = vmatprep.subr.mxu0 0.0
    %366 = vmatpush2.msra.mxu0 0.0
    %367 = vmatprep.subr.mxu0 0.0
    %368 = vmatpush2.msra.mxu0 0.0
    %369 = vmatprep.subr.mxu0 0.0
    %370 = vmatpush2.msra.mxu0 0.0
    %371 = vmatprep.subr.mxu0 0.0
    %372 = vmatpush2.msra.mxu0 0.0
    %373 = vmatprep.subr.mxu0 0.0
    %374 = vmatpush2.msra.mxu0 0.0
    %375 = vmatprep.subr.mxu0 0.0
    %376 = vmatpush2.msra.mxu0 0.0
    %377 = vmatprep.mubr.f32.mxu0 0.0
    %378 = vmatmul.mubr.f32.gmra.mxu0 %v311
    %v379 = vpop.f32.mrf.mxu0
    %v380 = vadd.f32 0.0, %v379
    %v381 = vpop.f32.mrf.mxu0
    %382 = vdwg.mxu0
    %v383 = vlaneseq
    %v384 = vshrl.u32 %v383, 7
    %v385 = vsub.s32 0, %v384
    %v386 = vrot.slane %v380, %v385
    %v387 = vmul.f32 %v174, %v386
    %v388 = vmul.f32 %v179, %v386
    %v389 = vld [vmem:[%s4] sm:$0x1]
    %v392 = vunpack.c.l.s4 1966171168
    %v393 = vunpack.c.0.s8 %v392
    %v394 = vlaneseq
    %v395 = vshrl.u32 %v394, 7
    %v396 = vsub.s32 %v393, %v395
    %v397 = vrot.slane %v380, %v396
    %v398 = vcombine.high %v397, %v397
    %v400 = vunpack.c.l.s4 1966171168
    %v401 = vunpack.c.0.s8 %v400
    %v402 = vlaneseq
    %v403 = vshrl.u32 %v402, 7
    %v404 = vsub.s32 %v401, %v403
    %v405 = vrot.slane %v398, %v404
    %v407 = vsub.f32 %v389, %v405
    %v409 = vlaneseq
    %v410 = vshrl.u32 %v409, 7
    %v411 = vsub.s32 0, %v410
    %v412 = vrot.slane %v407, %v411
    %v414 = vadd.f32 %v387, %v412
    %v415 = vadd.f32 %v388, %v412
    %v416 = vmax.f32 %v414, 0.0
    %v417 = vmax.f32 %v415, 0.0
    %v419 = vrot.slane %v416, 2
    %v421 = vmax.f32 %v416, %v419
    %v423 = vrot.slane %v417, 2
    %v425 = vmax.f32 %v417, %v423
    %v427 = vrot.slane %v421, 2
    %v430 = vrot.slane %v425, 4
    %vm432 = vcmask 1041408
    %v433 = vsel %vm432, %v421, %v427
    %vm434 = vcmask 1043456
    %v435 = vsel %vm434, %v433, %v430
    %v436 = vld [vmem:[%s5] sm:$0xff]
    %v437 = vld [vmem:[%s5 + $0x8] sm:$0xff]
    %v438 = vld [vmem:[%s5 + $0x10] sm:$0xff]
    %v439 = vld [vmem:[%s5 + $0x18] sm:$0xff]
    %v440 = vld [vmem:[%s5 + $0x20] sm:$0xff]
    %v441 = vld [vmem:[%s5 + $0x28] sm:$0xff]
    %v442 = vld [vmem:[%s5 + $0x30] sm:$0xff]
    %v443 = vld [vmem:[%s5 + $0x38] sm:$0xff]
    %v444 = vld [vmem:[%s5 + $0x40] sm:$0xff]
    %v445 = vld [vmem:[%s5 + $0x48] sm:$0xff]
    %v446 = vld [vmem:[%s5 + $0x50] sm:$0xff]
    %v447 = vld [vmem:[%s5 + $0x58] sm:$0xff]
    %v448 = vld [vmem:[%s5 + $0x60] sm:$0xff]
    %v450 = vsel %vm182, %v435, 0
    %452 = vmatprep.subr.mxu0 0.0
    %453 = vmatpush1.msra.mxu0 0.0
    %454 = vmatprep.subr.mxu0 0.0
    %455 = vmatpush1.msra.mxu0 0.0
    %456 = vmatprep.subr.mxu0 0.0
    %457 = vmatpush1.msra.mxu0 0.0
    %458 = vmatprep.subr.mxu0 0.0
    %459 = vmatpush1.msra.mxu0 %v448
    %460 = vmatprep.subr.mxu0 0.0
    %461 = vmatpush1.msra.mxu0 %v447
    %462 = vmatprep.subr.mxu0 0.0
    %463 = vmatpush1.msra.mxu0 %v446
    %464 = vmatprep.subr.mxu0 0.0
    %465 = vmatpush1.msra.mxu0 %v445
    %466 = vmatprep.subr.mxu0 0.0
    %467 = vmatpush1.msra.mxu0 %v444
    %468 = vmatprep.subr.mxu0 0.0
    %469 = vmatpush1.msra.mxu0 %v443
    %470 = vmatprep.subr.mxu0 0.0
    %471 = vmatpush1.msra.mxu0 %v442
    %472 = vmatprep.subr.mxu0 0.0
    %473 = vmatpush1.msra.mxu0 %v441
    %474 = vmatprep.subr.mxu0 0.0
    %475 = vmatpush1.msra.mxu0 %v440
    %476 = vmatprep.subr.mxu0 0.0
    %477 = vmatpush1.msra.mxu0 %v439
    %478 = vmatprep.subr.mxu0 0.0
    %479 = vmatpush1.msra.mxu0 %v438
    %480 = vmatprep.subr.mxu0 0.0
    %481 = vmatpush1.msra.mxu0 %v437
    %482 = vmatprep.subr.mxu0 0.0
    %483 = vmatpush1.msra.mxu0 %v436
    %484 = vmatprep.subr.mxu0 0.0
    %485 = vmatpush2.msra.mxu0 0.0
    %486 = vmatprep.subr.mxu0 0.0
    %487 = vmatpush2.msra.mxu0 0.0
    %488 = vmatprep.subr.mxu0 0.0
    %489 = vmatpush2.msra.mxu0 0.0
    %490 = vmatprep.subr.mxu0 0.0
    %491 = vmatpush2.msra.mxu0 0.0
    %492 = vmatprep.subr.mxu0 0.0
    %493 = vmatpush2.msra.mxu0 0.0
    %494 = vmatprep.subr.mxu0 0.0
    %495 = vmatpush2.msra.mxu0 0.0
    %496 = vmatprep.subr.mxu0 0.0
    %497 = vmatpush2.msra.mxu0 0.0
    %498 = vmatprep.subr.mxu0 0.0
    %499 = vmatpush2.msra.mxu0 0.0
    %500 = vmatprep.subr.mxu0 0.0
    %501 = vmatpush2.msra.mxu0 0.0
    %502 = vmatprep.subr.mxu0 0.0
    %503 = vmatpush2.msra.mxu0 0.0
    %504 = vmatprep.subr.mxu0 0.0
    %505 = vmatpush2.msra.mxu0 0.0
    %506 = vmatprep.subr.mxu0 0.0
    %507 = vmatpush2.msra.mxu0 0.0
    %508 = vmatprep.subr.mxu0 0.0
    %509 = vmatpush2.msra.mxu0 0.0
    %510 = vmatprep.subr.mxu0 0.0
    %511 = vmatpush2.msra.mxu0 0.0
    %512 = vmatprep.subr.mxu0 0.0
    %513 = vmatpush2.msra.mxu0 0.0
    %514 = vmatprep.subr.mxu0 0.0
    %515 = vmatpush2.msra.mxu0 0.0
    %516 = vmatprep.mubr.f32.mxu0 0.0
    %517 = vmatmul.mubr.f32.gmra.mxu0 %v450
    %v518 = vpop.f32.mrf.mxu0
    %v519 = vadd.f32 0.0, %v518
    %v520 = vpop.f32.mrf.mxu0
    %521 = vdwg.mxu0
    %v522 = vld [vmem:[%s6] sm:$0xff]
    %v523 = vld [vmem:[%s6 + $0x8] sm:$0xff]
    %v524 = vld [vmem:[%s6 + $0x10] sm:$0xff]
    %v525 = vld [vmem:[%s6 + $0x18] sm:$0xff]
    %v526 = vld [vmem:[%s6 + $0x20] sm:$0xff]
    %v527 = vld [vmem:[%s6 + $0x28] sm:$0xff]
    %v528 = vld [vmem:[%s6 + $0x30] sm:$0xff]
    %v529 = vld [vmem:[%s6 + $0x38] sm:$0xff]
    %v530 = vld [vmem:[%s6 + $0x40] sm:$0xff]
    %v531 = vld [vmem:[%s6 + $0x48] sm:$0xff]
    %v532 = vld [vmem:[%s6 + $0x50] sm:$0xff]
    %v533 = vld [vmem:[%s6 + $0x58] sm:$0xff]
    %v534 = vld [vmem:[%s6 + $0x60] sm:$0xff]
    %535 = vmatprep.subr.mxu0 0.0
    %536 = vmatpush1.msra.mxu0 0.0
    %537 = vmatprep.subr.mxu0 0.0
    %538 = vmatpush1.msra.mxu0 0.0
    %539 = vmatprep.subr.mxu0 0.0
    %540 = vmatpush1.msra.mxu0 0.0
    %541 = vmatprep.subr.mxu0 0.0
    %542 = vmatpush1.msra.mxu0 %v534
    %543 = vmatprep.subr.mxu0 0.0
    %544 = vmatpush1.msra.mxu0 %v533
    %545 = vmatprep.subr.mxu0 0.0
    %546 = vmatpush1.msra.mxu0 %v532
    %547 = vmatprep.subr.mxu0 0.0
    %548 = vmatpush1.msra.mxu0 %v531
    %549 = vmatprep.subr.mxu0 0.0
    %550 = vmatpush1.msra.mxu0 %v530
    %551 = vmatprep.subr.mxu0 0.0
    %552 = vmatpush1.msra.mxu0 %v529
    %553 = vmatprep.subr.mxu0 0.0
    %554 = vmatpush1.msra.mxu0 %v528
    %555 = vmatprep.subr.mxu0 0.0
    %556 = vmatpush1.msra.mxu0 %v527
    %557 = vmatprep.subr.mxu0 0.0
    %558 = vmatpush1.msra.mxu0 %v526
    %559 = vmatprep.subr.mxu0 0.0
    %560 = vmatpush1.msra.mxu0 %v525
    %561 = vmatprep.subr.mxu0 0.0
    %562 = vmatpush1.msra.mxu0 %v524
    %563 = vmatprep.subr.mxu0 0.0
    %564 = vmatpush1.msra.mxu0 %v523
    %565 = vmatprep.subr.mxu0 0.0
    %566 = vmatpush1.msra.mxu0 %v522
    %567 = vmatprep.subr.mxu0 0.0
    %568 = vmatpush2.msra.mxu0 0.0
    %569 = vmatprep.subr.mxu0 0.0
    %570 = vmatpush2.msra.mxu0 0.0
    %571 = vmatprep.subr.mxu0 0.0
    %572 = vmatpush2.msra.mxu0 0.0
    %573 = vmatprep.subr.mxu0 0.0
    %574 = vmatpush2.msra.mxu0 0.0
    %575 = vmatprep.subr.mxu0 0.0
    %576 = vmatpush2.msra.mxu0 0.0
    %577 = vmatprep.subr.mxu0 0.0
    %578 = vmatpush2.msra.mxu0 0.0
    %579 = vmatprep.subr.mxu0 0.0
    %580 = vmatpush2.msra.mxu0 0.0
    %581 = vmatprep.subr.mxu0 0.0
    %582 = vmatpush2.msra.mxu0 0.0
    %583 = vmatprep.subr.mxu0 0.0
    %584 = vmatpush2.msra.mxu0 0.0
    %585 = vmatprep.subr.mxu0 0.0
    %586 = vmatpush2.msra.mxu0 0.0
    %587 = vmatprep.subr.mxu0 0.0
    %588 = vmatpush2.msra.mxu0 0.0
    %589 = vmatprep.subr.mxu0 0.0
    %590 = vmatpush2.msra.mxu0 0.0
    %591 = vmatprep.subr.mxu0 0.0
    %592 = vmatpush2.msra.mxu0 0.0
    %593 = vmatprep.subr.mxu0 0.0
    %594 = vmatpush2.msra.mxu0 0.0
    %595 = vmatprep.subr.mxu0 0.0
    %596 = vmatpush2.msra.mxu0 0.0
    %597 = vmatprep.subr.mxu0 0.0
    %598 = vmatpush2.msra.mxu0 0.0
    %599 = vmatprep.mubr.f32.mxu0 0.0
    %600 = vmatmul.mubr.f32.gmra.mxu0 %v450
    %v601 = vpop.f32.mrf.mxu0
    %v602 = vadd.f32 0.0, %v601
    %v603 = vpop.f32.mrf.mxu0
    %604 = vdwg.mxu0
    %v605 = vmax.f32 %v519, %v602
    %607 = vrot.lane.b32.xlu0 %v605, 48
    %v608 = vpop.permute.xlu0 %607
    %vm610 = vcmask 783744
    %611 = vst.msk [vmem:[#allocation3] sm:$0x3f] %vm610, %v608
    %vm612 = vcmask 386048
    %613 = vst.msk [vmem:[#allocation3] sm:$0x3] %vm612, 0.0
    %v614 = vrot.slane %v605, 6
    %vm616 = vcmask 390146
    %617 = vst.msk [vmem:[#allocation3] sm:$0x3c] %vm616, %v614
    %v618 = vrot.slane %v605, 2
    %619 = vrot.lane.b32.xlu0 %v618, 96
    %v620 = vpop.permute.xlu0 %619
    %vm622 = vcmask 1044224
    %623 = vst.msk [vmem:[#allocation3] sm:$0xf] %vm622, %v620
    %vm624 = vcmask 125952
    %625 = vst.msk [vmem:[#allocation3 + $0x8] sm:$0xf] %vm624, %v620
    %vm626 = vcmask 1046276
    %627 = vst.msk [vmem:[#allocation3] sm:$0x30] %vm626, 0.0
    %vm628 = vcmask 128004
    %629 = vst.msk [vmem:[#allocation3 + $0x8] sm:$0x30] %vm628, 0.0
    %v630 = vld [vmem:[#allocation3] sm:$0x3f]
    %v631 = vld [vmem:[#allocation3 + $0x8] sm:$0x3f]
    %v632 = vld [vmem:[%s7] sm:$0xff]
    %v633 = vld [vmem:[%s7 + $0x8] sm:$0xff]
    %v634 = vld [vmem:[%s7 + $0x10] sm:$0xff]
    %v635 = vld [vmem:[%s7 + $0x18] sm:$0xff]
    %v636 = vld [vmem:[%s7 + $0x20] sm:$0xff]
    %v637 = vld [vmem:[%s7 + $0x28] sm:$0xff]
    %v638 = vld [vmem:[%s7 + $0x30] sm:$0xff]
    %v639 = vld [vmem:[%s7 + $0x38] sm:$0xff]
    %v640 = vld [vmem:[%s7 + $0x40] sm:$0xff]
    %v641 = vld [vmem:[%s7 + $0x48] sm:$0xff]
    %v642 = vld [vmem:[%s7 + $0x50] sm:$0xff]
    %v643 = vld [vmem:[%s7 + $0x58] sm:$0xff]
    %v644 = vld [vmem:[%s7 + $0x60] sm:$0xff]
    %v645 = vld [vmem:[%s7 + $0x68] sm:$0xff]
    %v646 = vld [vmem:[%s7 + $0x70] sm:$0xff]
    %v647 = vld [vmem:[%s7 + $0x78] sm:$0xff]
    %v648 = vld [vmem:[%s7 + $0x80] sm:$0xff]
    %v649 = vld [vmem:[%s7 + $0x88] sm:$0xff]
    %vm650 = vcmask 130048
    %v652 = vsel %vm650, %v631, 0
    %654 = vmatprep.subr.mxu0 0.0
    %655 = vmatpush1.msra.mxu0 %v647
    %656 = vmatprep.subr.mxu0 0.0
    %657 = vmatpush1.msra.mxu0 %v646
    %658 = vmatprep.subr.mxu0 0.0
    %659 = vmatpush1.msra.mxu0 %v645
    %660 = vmatprep.subr.mxu0 0.0
    %661 = vmatpush1.msra.mxu0 %v644
    %662 = vmatprep.subr.mxu0 0.0
    %663 = vmatpush1.msra.mxu0 %v643
    %664 = vmatprep.subr.mxu0 0.0
    %665 = vmatpush1.msra.mxu0 %v642
    %666 = vmatprep.subr.mxu0 0.0
    %667 = vmatpush1.msra.mxu0 %v641
    %668 = vmatprep.subr.mxu0 0.0
    %669 = vmatpush1.msra.mxu0 %v640
    %670 = vmatprep.subr.mxu0 0.0
    %671 = vmatpush1.msra.mxu0 %v639
    %672 = vmatprep.subr.mxu0 0.0
    %673 = vmatpush1.msra.mxu0 %v638
    %674 = vmatprep.subr.mxu0 0.0
    %675 = vmatpush1.msra.mxu0 %v637
    %676 = vmatprep.subr.mxu0 0.0
    %677 = vmatpush1.msra.mxu0 %v636
    %678 = vmatprep.subr.mxu0 0.0
    %679 = vmatpush1.msra.mxu0 %v635
    %680 = vmatprep.subr.mxu0 0.0
    %681 = vmatpush1.msra.mxu0 %v634
    %682 = vmatprep.subr.mxu0 0.0
    %683 = vmatpush1.msra.mxu0 %v633
    %684 = vmatprep.subr.mxu0 0.0
    %685 = vmatpush1.msra.mxu0 %v632
    %686 = vmatprep.subr.mxu0 0.0
    %687 = vmatpush2.msra.mxu0 0.0
    %688 = vmatprep.subr.mxu0 0.0
    %689 = vmatpush2.msra.mxu0 0.0
    %690 = vmatprep.subr.mxu0 0.0
    %691 = vmatpush2.msra.mxu0 0.0
    %692 = vmatprep.subr.mxu0 0.0
    %693 = vmatpush2.msra.mxu0 0.0
    %694 = vmatprep.subr.mxu0 0.0
    %695 = vmatpush2.msra.mxu0 0.0
    %696 = vmatprep.subr.mxu0 0.0
    %697 = vmatpush2.msra.mxu0 0.0
    %698 = vmatprep.subr.mxu0 0.0
    %699 = vmatpush2.msra.mxu0 0.0
    %700 = vmatprep.subr.mxu0 0.0
    %701 = vmatpush2.msra.mxu0 0.0
    %702 = vmatprep.subr.mxu0 0.0
    %703 = vmatpush2.msra.mxu0 0.0
    %704 = vmatprep.subr.mxu0 0.0
    %705 = vmatpush2.msra.mxu0 0.0
    %706 = vmatprep.subr.mxu0 0.0
    %707 = vmatpush2.msra.mxu0 0.0
    %708 = vmatprep.subr.mxu0 0.0
    %709 = vmatpush2.msra.mxu0 0.0
    %710 = vmatprep.subr.mxu0 0.0
    %711 = vmatpush2.msra.mxu0 0.0
    %712 = vmatprep.subr.mxu0 0.0
    %713 = vmatpush2.msra.mxu0 0.0
    %714 = vmatprep.subr.mxu0 0.0
    %715 = vmatpush2.msra.mxu0 %v649
    %716 = vmatprep.subr.mxu0 0.0
    %717 = vmatpush2.msra.mxu0 %v648
    %718 = vmatprep.mubr.f32.mxu0 %v652
    %719 = vmatmul.mubr.f32.gmra.mxu0 %v630
    %v720 = vpop.f32.mrf.mxu0
    %v721 = vadd.f32 0.0, %v720
    %v722 = vpop.f32.mrf.mxu0
    %723 = vdwg.mxu0
    %vm724 = vcmask 783360
    %v725 = vsel %vm724, %v721, 0.0
    %v726 = vrot.slane %v725, 4
    %v727 = vadd.f32 %v725, %v726
    %v728 = vrot.slane %v727, 2
    %v729 = vadd.f32 %v727, %v728
    %v730 = vrot.slane %v729, 1
    %v731 = vadd.f32 %v729, %v730
    %v732 = vmul.f32 %v721, %v721
    %v733 = vsel %vm724, %v732, 0.0
    %v734 = vrot.slane %v733, 4
    %v735 = vadd.f32 %v733, %v734
    %v736 = vrot.slane %v735, 2
    %v737 = vadd.f32 %v735, %v736
    %v738 = vrot.slane %v737, 1
    %v739 = vadd.f32 %v737, %v738
    %v740 = vsel %vm204, %v731, %v739
    %v741 = vld [vmem:[%s8] sm:$0xff]
    %v742 = vld [vmem:[%s8 + $0x8] sm:$0xff]
    %v743 = vld [vmem:[%s8 + $0x10] sm:$0xff]
    %v744 = vld [vmem:[%s8 + $0x18] sm:$0xff]
    %v745 = vld [vmem:[%s8 + $0x20] sm:$0xff]
    %v746 = vld [vmem:[%s8 + $0x28] sm:$0xff]
    %v747 = vld [vmem:[%s8 + $0x30] sm:$0xff]
    %v748 = vld [vmem:[%s8 + $0x38] sm:$0xff]
    %v749 = vld [vmem:[%s8 + $0x40] sm:$0xff]
    %v750 = vld [vmem:[%s8 + $0x48] sm:$0xff]
    %v751 = vld [vmem:[%s8 + $0x50] sm:$0xff]
    %v752 = vld [vmem:[%s8 + $0x58] sm:$0xff]
    %vm753 = vcmask 785408
    %v755 = vsel %vm753, %v740, 0
    %757 = vmatprep.subr.mxu0 0.0
    %758 = vmatpush1.msra.mxu0 0.0
    %759 = vmatprep.subr.mxu0 0.0
    %760 = vmatpush1.msra.mxu0 0.0
    %761 = vmatprep.subr.mxu0 0.0
    %762 = vmatpush1.msra.mxu0 0.0
    %763 = vmatprep.subr.mxu0 0.0
    %764 = vmatpush1.msra.mxu0 0.0
    %765 = vmatprep.subr.mxu0 0.0
    %766 = vmatpush1.msra.mxu0 %v752
    %767 = vmatprep.subr.mxu0 0.0
    %768 = vmatpush1.msra.mxu0 %v751
    %769 = vmatprep.subr.mxu0 0.0
    %770 = vmatpush1.msra.mxu0 %v750
    %771 = vmatprep.subr.mxu0 0.0
    %772 = vmatpush1.msra.mxu0 %v749
    %773 = vmatprep.subr.mxu0 0.0
    %774 = vmatpush1.msra.mxu0 %v748
    %775 = vmatprep.subr.mxu0 0.0
    %776 = vmatpush1.msra.mxu0 %v747
    %777 = vmatprep.subr.mxu0 0.0
    %778 = vmatpush1.msra.mxu0 %v746
    %779 = vmatprep.subr.mxu0 0.0
    %780 = vmatpush1.msra.mxu0 %v745
    %781 = vmatprep.subr.mxu0 0.0
    %782 = vmatpush1.msra.mxu0 %v744
    %783 = vmatprep.subr.mxu0 0.0
    %784 = vmatpush1.msra.mxu0 %v743
    %785 = vmatprep.subr.mxu0 0.0
    %786 = vmatpush1.msra.mxu0 %v742
    %787 = vmatprep.subr.mxu0 0.0
    %788 = vmatpush1.msra.mxu0 %v741
    %789 = vmatprep.subr.mxu0 0.0
    %790 = vmatpush2.msra.mxu0 0.0
    %791 = vmatprep.subr.mxu0 0.0
    %792 = vmatpush2.msra.mxu0 0.0
    %793 = vmatprep.subr.mxu0 0.0
    %794 = vmatpush2.msra.mxu0 0.0
    %795 = vmatprep.subr.mxu0 0.0
    %796 = vmatpush2.msra.mxu0 0.0
    %797 = vmatprep.subr.mxu0 0.0
    %798 = vmatpush2.msra.mxu0 0.0
    %799 = vmatprep.subr.mxu0 0.0
    %800 = vmatpush2.msra.mxu0 0.0
    %801 = vmatprep.subr.mxu0 0.0
    %802 = vmatpush2.msra.mxu0 0.0
    %803 = vmatprep.subr.mxu0 0.0
    %804 = vmatpush2.msra.mxu0 0.0
    %805 = vmatprep.subr.mxu0 0.0
    %806 = vmatpush2.msra.mxu0 0.0
    %807 = vmatprep.subr.mxu0 0.0
    %808 = vmatpush2.msra.mxu0 0.0
    %809 = vmatprep.subr.mxu0 0.0
    %810 = vmatpush2.msra.mxu0 0.0
    %811 = vmatprep.subr.mxu0 0.0
    %812 = vmatpush2.msra.mxu0 0.0
    %813 = vmatprep.subr.mxu0 0.0
    %814 = vmatpush2.msra.mxu0 0.0
    %815 = vmatprep.subr.mxu0 0.0
    %816 = vmatpush2.msra.mxu0 0.0
    %817 = vmatprep.subr.mxu0 0.0
    %818 = vmatpush2.msra.mxu0 0.0
    %819 = vmatprep.subr.mxu0 0.0
    %820 = vmatpush2.msra.mxu0 0.0
    %821 = vmatprep.mubr.f32.mxu0 0.0
    %822 = vmatmul.mubr.f32.gmra.mxu0 %v755
    %v823 = vpop.f32.mrf.mxu0
    %v824 = vadd.f32 0.0, %v823
    %v825 = vpop.f32.mrf.mxu0
    %826 = vdwg.mxu0
    %v827 = vmul.f32 %v824, 0.027777778
    %v828 = vmul.f32 %v827, %v827
    %v830 = vrot.slane %v828, 7
    %v832 = vsub.f32 %v827, %v830
    %v833 = vadd.f32 %v832, 1e-05
    %v834 = vrsqrt.pop %v833
    %v836 = vrot.slane %v834, 1
    %v838 = vmul.f32 %v827, %v836
    %v840 = vrot.slane %v838, 7
    %v842 = vsel %vm204, %v836, %v840
    %v843 = vld [vmem:[%s9] sm:$0xff]
    %v844 = vld [vmem:[%s9 + $0x8] sm:$0xff]
    %v846 = vsel %vm650, %v842, 0
    %848 = vmatprep.subr.mxu0 0.0
    %849 = vmatpush1.msra.mxu0 0.0
    %850 = vmatprep.subr.mxu0 0.0
    %851 = vmatpush1.msra.mxu0 0.0
    %852 = vmatprep.subr.mxu0 0.0
    %853 = vmatpush1.msra.mxu0 0.0
    %854 = vmatprep.subr.mxu0 0.0
    %855 = vmatpush1.msra.mxu0 0.0
    %856 = vmatprep.subr.mxu0 0.0
    %857 = vmatpush1.msra.mxu0 0.0
    %858 = vmatprep.subr.mxu0 0.0
    %859 = vmatpush1.msra.mxu0 0.0
    %860 = vmatprep.subr.mxu0 0.0
    %861 = vmatpush1.msra.mxu0 0.0
    %862 = vmatprep.subr.mxu0 0.0
    %863 = vmatpush1.msra.mxu0 0.0
    %864 = vmatprep.subr.mxu0 0.0
    %865 = vmatpush1.msra.mxu0 0.0
    %866 = vmatprep.subr.mxu0 0.0
    %867 = vmatpush1.msra.mxu0 0.0
    %868 = vmatprep.subr.mxu0 0.0
    %869 = vmatpush1.msra.mxu0 0.0
    %870 = vmatprep.subr.mxu0 0.0
    %871 = vmatpush1.msra.mxu0 0.0
    %872 = vmatprep.subr.mxu0 0.0
    %873 = vmatpush1.msra.mxu0 0.0
    %874 = vmatprep.subr.mxu0 0.0
    %875 = vmatpush1.msra.mxu0 0.0
    %876 = vmatprep.subr.mxu0 0.0
    %877 = vmatpush1.msra.mxu0 %v844
    %878 = vmatprep.subr.mxu0 0.0
    %879 = vmatpush1.msra.mxu0 %v843
    %880 = vmatprep.subr.mxu0 0.0
    %881 = vmatpush2.msra.mxu0 0.0
    %882 = vmatprep.subr.mxu0 0.0
    %883 = vmatpush2.msra.mxu0 0.0
    %884 = vmatprep.subr.mxu0 0.0
    %885 = vmatpush2.msra.mxu0 0.0
    %886 = vmatprep.subr.mxu0 0.0
    %887 = vmatpush2.msra.mxu0 0.0
    %888 = vmatprep.subr.mxu0 0.0
    %889 = vmatpush2.msra.mxu0 0.0
    %890 = vmatprep.subr.mxu0 0.0
    %891 = vmatpush2.msra.mxu0 0.0
    %892 = vmatprep.subr.mxu0 0.0
    %893 = vmatpush2.msra.mxu0 0.0
    %894 = vmatprep.subr.mxu0 0.0
    %895 = vmatpush2.msra.mxu0 0.0
    %896 = vmatprep.subr.mxu0 0.0
    %897 = vmatpush2.msra.mxu0 0.0
    %898 = vmatprep.subr.mxu0 0.0
    %899 = vmatpush2.msra.mxu0 0.0
    %900 = vmatprep.subr.mxu0 0.0
    %901 = vmatpush2.msra.mxu0 0.0
    %902 = vmatprep.subr.mxu0 0.0
    %903 = vmatpush2.msra.mxu0 0.0
    %904 = vmatprep.subr.mxu0 0.0
    %905 = vmatpush2.msra.mxu0 0.0
    %906 = vmatprep.subr.mxu0 0.0
    %907 = vmatpush2.msra.mxu0 0.0
    %908 = vmatprep.subr.mxu0 0.0
    %909 = vmatpush2.msra.mxu0 0.0
    %910 = vmatprep.subr.mxu0 0.0
    %911 = vmatpush2.msra.mxu0 0.0
    %912 = vmatprep.mubr.f32.mxu0 0.0
    %913 = vmatmul.mubr.f32.gmra.mxu0 %v846
    %v914 = vpop.f32.mrf.mxu0
    %v915 = vadd.f32 0.0, %v914
    %v916 = vpop.f32.mrf.mxu0
    %917 = vdwg.mxu0
    %v918 = vlaneseq
    %v919 = vshrl.u32 %v918, 7
    %v920 = vsub.s32 0, %v919
    %v921 = vrot.slane %v915, %v920
    %v922 = vmul.f32 %v721, %v921
    %v923 = vld [vmem:[%s10] sm:$0x1]
    %v926 = vunpack.c.l.s4 1966171168
    %v927 = vunpack.c.0.s8 %v926
    %v928 = vlaneseq
    %v929 = vshrl.u32 %v928, 7
    %v930 = vsub.s32 %v927, %v929
    %v931 = vrot.slane %v915, %v930
    %v932 = vcombine.high %v931, %v931
    %v934 = vunpack.c.l.s4 1966171168
    %v935 = vunpack.c.0.s8 %v934
    %v936 = vlaneseq
    %v937 = vshrl.u32 %v936, 7
    %v938 = vsub.s32 %v935, %v937
    %v939 = vrot.slane %v932, %v938
    %v941 = vsub.f32 %v923, %v939
    %v943 = vlaneseq
    %v944 = vshrl.u32 %v943, 7
    %v945 = vsub.s32 0, %v944
    %v946 = vrot.slane %v941, %v945
    %v948 = vadd.f32 %v922, %v946
    %v949 = vmax.f32 %v948, 0.0
    %v950 = vld [vmem:[%s11] sm:$0xff]
    %v951 = vld [vmem:[%s11 + $0x8] sm:$0xff]
    %v952 = vld [vmem:[%s11 + $0x10] sm:$0xff]
    %v953 = vld [vmem:[%s11 + $0x18] sm:$0xff]
    %v954 = vld [vmem:[%s11 + $0x20] sm:$0xff]
    %v955 = vld [vmem:[%s11 + $0x28] sm:$0xff]
    %v956 = vld [vmem:[%s11 + $0x30] sm:$0xff]
    %v957 = vld [vmem:[%s11 + $0x38] sm:$0xff]
    %v958 = vld [vmem:[%s11 + $0x40] sm:$0xff]
    %v959 = vld [vmem:[%s11 + $0x48] sm:$0xff]
    %v960 = vld [vmem:[%s11 + $0x50] sm:$0xff]
    %v961 = vld [vmem:[%s11 + $0x58] sm:$0xff]
    %v962 = vld [vmem:[%s11 + $0x60] sm:$0xff]
    %v963 = vld [vmem:[%s11 + $0x68] sm:$0xff]
    %v964 = vld [vmem:[%s11 + $0x70] sm:$0xff]
    %v965 = vld [vmem:[%s11 + $0x78] sm:$0xff]
    %v966 = vld [vmem:[%s11 + $0x80] sm:$0xff]
    %v967 = vld [vmem:[%s11 + $0x88] sm:$0xff]
    %v968 = vld [vmem:[%s11 + $0x90] sm:$0xff]
    %v969 = vld [vmem:[%s11 + $0x98] sm:$0xff]
    %v970 = vld [vmem:[%s11 + $0xa0] sm:$0xff]
    %v971 = vld [vmem:[%s11 + $0xa8] sm:$0xff]
    %v972 = vld [vmem:[%s11 + $0xb0] sm:$0xff]
    %v973 = vld [vmem:[%s11 + $0xb8] sm:$0xff]
    %v974 = vld [vmem:[%s11 + $0xc0] sm:$0xff]
    %v975 = vld [vmem:[%s11 + $0xc8] sm:$0xff]
    %v976 = vld [vmem:[%s11 + $0xd0] sm:$0xff]
    %v977 = vld [vmem:[%s11 + $0xd8] sm:$0xff]
    %v978 = vld [vmem:[%s11 + $0xe0] sm:$0xff]
    %v979 = vld [vmem:[%s11 + $0xe8] sm:$0xff]
    %v980 = vld [vmem:[%s11 + $0xf0] sm:$0xff]
    %v981 = vld [vmem:[%s11 + $0xf8] sm:$0xff]
    %v982 = vld [vmem:[%s11 + $0x100] sm:$0xff]
    %v983 = vld [vmem:[%s11 + $0x108] sm:$0xff]
    %v984 = vld [vmem:[%s11 + $0x110] sm:$0xff]
    %v985 = vld [vmem:[%s11 + $0x118] sm:$0xff]
    %v986 = vld [vmem:[%s11 + $0x120] sm:$0xff]
    %v987 = vld [vmem:[%s11 + $0x128] sm:$0xff]
    %v988 = vld [vmem:[%s11 + $0x130] sm:$0xff]
    %v989 = vld [vmem:[%s11 + $0x138] sm:$0xff]
    %v990 = vld [vmem:[%s11 + $0x140] sm:$0xff]
    %v991 = vld [vmem:[%s11 + $0x148] sm:$0xff]
    %v992 = vld [vmem:[%s11 + $0x150] sm:$0xff]
    %v993 = vld [vmem:[%s11 + $0x158] sm:$0xff]
    %v994 = vld [vmem:[%s11 + $0x160] sm:$0xff]
    %v995 = vld [vmem:[%s11 + $0x168] sm:$0xff]
    %v996 = vld [vmem:[%s11 + $0x170] sm:$0xff]
    %v997 = vld [vmem:[%s11 + $0x178] sm:$0xff]
    %v999 = vrot.slane %v949, 2
    %v1000 = vsel %vm753, %v999, 0
    %1002 = vmatprep.subr.mxu0 0.0
    %1003 = vmatpush1.msra.mxu0 0.0
    %1004 = vmatprep.subr.mxu0 0.0
    %1005 = vmatpush1.msra.mxu0 0.0
    %1006 = vmatprep.subr.mxu0 0.0
    %1007 = vmatpush1.msra.mxu0 0.0
    %1008 = vmatprep.subr.mxu0 0.0
    %1009 = vmatpush1.msra.mxu0 0.0
    %1010 = vmatprep.subr.mxu0 %v997
    %1011 = vmatpush1.msra.mxu0 %v996
    %1012 = vmatprep.subr.mxu0 %v995
    %1013 = vmatpush1.msra.mxu0 %v994
    %1014 = vmatprep.subr.mxu0 %v993
    %1015 = vmatpush1.msra.mxu0 %v992
    %1016 = vmatprep.subr.mxu0 %v991
    %1017 = vmatpush1.msra.mxu0 %v990
    %1018 = vmatprep.subr.mxu0 %v989
    %1019 = vmatpush1.msra.mxu0 %v988
    %1020 = vmatprep.subr.mxu0 %v987
    %1021 = vmatpush1.msra.mxu0 %v986
    %1022 = vmatprep.subr.mxu0 %v985
    %1023 = vmatpush1.msra.mxu0 %v984
    %1024 = vmatprep.subr.mxu0 %v983
    %1025 = vmatpush1.msra.mxu0 %v982
    %1026 = vmatprep.subr.mxu0 %v981
    %1027 = vmatpush1.msra.mxu0 %v980
    %1028 = vmatprep.subr.mxu0 %v979
    %1029 = vmatpush1.msra.mxu0 %v978
    %1030 = vmatprep.subr.mxu0 %v977
    %1031 = vmatpush1.msra.mxu0 %v976
    %1032 = vmatprep.subr.mxu0 %v975
    %1033 = vmatpush1.msra.mxu0 %v974
    %1034 = vmatprep.subr.mxu0 0.0
    %1035 = vmatpush2.msra.mxu0 0.0
    %1036 = vmatprep.subr.mxu0 0.0
    %1037 = vmatpush2.msra.mxu0 0.0
    %1038 = vmatprep.subr.mxu0 0.0
    %1039 = vmatpush2.msra.mxu0 0.0
    %1040 = vmatprep.subr.mxu0 0.0
    %1041 = vmatpush2.msra.mxu0 0.0
    %1042 = vmatprep.subr.mxu0 0.0
    %1043 = vmatpush2.msra.mxu0 0.0
    %1044 = vmatprep.subr.mxu0 0.0
    %1045 = vmatpush2.msra.mxu0 0.0
    %1046 = vmatprep.subr.mxu0 0.0
    %1047 = vmatpush2.msra.mxu0 0.0
    %1048 = vmatprep.subr.mxu0 0.0
    %1049 = vmatpush2.msra.mxu0 0.0
    %1050 = vmatprep.subr.mxu0 0.0
    %1051 = vmatpush2.msra.mxu0 0.0
    %1052 = vmatprep.subr.mxu0 0.0
    %1053 = vmatpush2.msra.mxu0 0.0
    %1054 = vmatprep.subr.mxu0 0.0
    %1055 = vmatpush2.msra.mxu0 0.0
    %1056 = vmatprep.subr.mxu0 0.0
    %1057 = vmatpush2.msra.mxu0 0.0
    %1058 = vmatprep.subr.mxu0 0.0
    %1059 = vmatpush2.msra.mxu0 0.0
    %1060 = vmatprep.subr.mxu0 0.0
    %1061 = vmatpush2.msra.mxu0 0.0
    %1062 = vmatprep.subr.mxu0 0.0
    %1063 = vmatpush2.msra.mxu0 0.0
    %1064 = vmatprep.subr.mxu0 0.0
    %1065 = vmatpush2.msra.mxu0 0.0
    %1066 = vmatprep.mubr.f32.mxu0 0.0
    %1067 = vmatmul.mubr.f32.gmra.mxu0 %v1000
    %v1068 = vpop.f32.mrf.mxu0
    %v1069 = vadd.f32 0.0, %v1068
    %v1070 = vpop.f32.mrf.mxu0
    %v1071 = vadd.f32 0.0, %v1070
    %1072 = vdwg.mxu0
    %v1073 = vsel %vm753, %v949, 0
    %1075 = vmatprep.subr.mxu0 0.0
    %1076 = vmatpush1.msra.mxu0 0.0
    %1077 = vmatprep.subr.mxu0 0.0
    %1078 = vmatpush1.msra.mxu0 0.0
    %1079 = vmatprep.subr.mxu0 0.0
    %1080 = vmatpush1.msra.mxu0 0.0
    %1081 = vmatprep.subr.mxu0 0.0
    %1082 = vmatpush1.msra.mxu0 0.0
    %1083 = vmatprep.subr.mxu0 %v973
    %1084 = vmatpush1.msra.mxu0 %v972
    %1085 = vmatprep.subr.mxu0 %v971
    %1086 = vmatpush1.msra.mxu0 %v970
    %1087 = vmatprep.subr.mxu0 %v969
    %1088 = vmatpush1.msra.mxu0 %v968
    %1089 = vmatprep.subr.mxu0 %v967
    %1090 = vmatpush1.msra.mxu0 %v966
    %1091 = vmatprep.subr.mxu0 %v965
    %1092 = vmatpush1.msra.mxu0 %v964
    %1093 = vmatprep.subr.mxu0 %v963
    %1094 = vmatpush1.msra.mxu0 %v962
    %1095 = vmatprep.subr.mxu0 %v961
    %1096 = vmatpush1.msra.mxu0 %v960
    %1097 = vmatprep.subr.mxu0 %v959
    %1098 = vmatpush1.msra.mxu0 %v958
    %1099 = vmatprep.subr.mxu0 %v957
    %1100 = vmatpush1.msra.mxu0 %v956
    %1101 = vmatprep.subr.mxu0 %v955
    %1102 = vmatpush1.msra.mxu0 %v954
    %1103 = vmatprep.subr.mxu0 %v953
    %1104 = vmatpush1.msra.mxu0 %v952
    %1105 = vmatprep.subr.mxu0 %v951
    %1106 = vmatpush1.msra.mxu0 %v950
    %1107 = vmatprep.subr.mxu0 0.0
    %1108 = vmatpush2.msra.mxu0 0.0
    %1109 = vmatprep.subr.mxu0 0.0
    %1110 = vmatpush2.msra.mxu0 0.0
    %1111 = vmatprep.subr.mxu0 0.0
    %1112 = vmatpush2.msra.mxu0 0.0
    %1113 = vmatprep.subr.mxu0 0.0
    %1114 = vmatpush2.msra.mxu0 0.0
    %1115 = vmatprep.subr.mxu0 0.0
    %1116 = vmatpush2.msra.mxu0 0.0
    %1117 = vmatprep.subr.mxu0 0.0
    %1118 = vmatpush2.msra.mxu0 0.0
    %1119 = vmatprep.subr.mxu0 0.0
    %1120 = vmatpush2.msra.mxu0 0.0
    %1121 = vmatprep.subr.mxu0 0.0
    %1122 = vmatpush2.msra.mxu0 0.0
    %1123 = vmatprep.subr.mxu0 0.0
    %1124 = vmatpush2.msra.mxu0 0.0
    %1125 = vmatprep.subr.mxu0 0.0
    %1126 = vmatpush2.msra.mxu0 0.0
    %1127 = vmatprep.subr.mxu0 0.0
    %1128 = vmatpush2.msra.mxu0 0.0
    %1129 = vmatprep.subr.mxu0 0.0
    %1130 = vmatpush2.msra.mxu0 0.0
    %1131 = vmatprep.subr.mxu0 0.0
    %1132 = vmatpush2.msra.mxu0 0.0
    %1133 = vmatprep.subr.mxu0 0.0
    %1134 = vmatpush2.msra.mxu0 0.0
    %1135 = vmatprep.subr.mxu0 0.0
    %1136 = vmatpush2.msra.mxu0 0.0
    %1137 = vmatprep.subr.mxu0 0.0
    %1138 = vmatpush2.msra.mxu0 0.0
    %1139 = vmatprep.mubr.f32.mxu0 0.0
    %1140 = vmatmul.mubr.f32.gmra.mxu0 %v1073
    %v1141 = vpop.f32.mrf.mxu0
    %v1142 = vadd.f32 %v1069, %v1141
    %v1143 = vpop.f32.mrf.mxu0
    %v1144 = vadd.f32 %v1071, %v1143
    %1145 = vdwg.mxu0
    %v1146 = vld [vmem:[%s11 + $0x180] sm:$0xff]
    %v1147 = vld [vmem:[%s11 + $0x188] sm:$0xff]
    %v1148 = vld [vmem:[%s11 + $0x190] sm:$0xff]
    %v1149 = vld [vmem:[%s11 + $0x198] sm:$0xff]
    %v1150 = vld [vmem:[%s11 + $0x1a0] sm:$0xff]
    %v1151 = vld [vmem:[%s11 + $0x1a8] sm:$0xff]
    %v1152 = vld [vmem:[%s11 + $0x1b0] sm:$0xff]
    %v1153 = vld [vmem:[%s11 + $0x1b8] sm:$0xff]
    %v1154 = vld [vmem:[%s11 + $0x1c0] sm:$0xff]
    %v1155 = vld [vmem:[%s11 + $0x1c8] sm:$0xff]
    %v1156 = vld [vmem:[%s11 + $0x1d0] sm:$0xff]
    %v1157 = vld [vmem:[%s11 + $0x1d8] sm:$0xff]
    %v1158 = vld [vmem:[%s11 + $0x1e0] sm:$0xff]
    %v1159 = vld [vmem:[%s11 + $0x1e8] sm:$0xff]
    %v1160 = vld [vmem:[%s11 + $0x1f0] sm:$0xff]
    %v1161 = vld [vmem:[%s11 + $0x1f8] sm:$0xff]
    %v1162 = vld [vmem:[%s11 + $0x200] sm:$0xff]
    %v1163 = vld [vmem:[%s11 + $0x208] sm:$0xff]
    %v1164 = vld [vmem:[%s11 + $0x210] sm:$0xff]
    %v1165 = vld [vmem:[%s11 + $0x218] sm:$0xff]
    %v1166 = vld [vmem:[%s11 + $0x220] sm:$0xff]
    %v1167 = vld [vmem:[%s11 + $0x228] sm:$0xff]
    %v1168 = vld [vmem:[%s11 + $0x230] sm:$0xff]
    %v1169 = vld [vmem:[%s11 + $0x238] sm:$0xff]
    %v1170 = vrot.slane %v949, 4
    %v1171 = vsel %vm753, %v1170, 0
    %1173 = vmatprep.subr.mxu0 0.0
    %1174 = vmatpush1.msra.mxu0 0.0
    %1175 = vmatprep.subr.mxu0 0.0
    %1176 = vmatpush1.msra.mxu0 0.0
    %1177 = vmatprep.subr.mxu0 0.0
    %1178 = vmatpush1.msra.mxu0 0.0
    %1179 = vmatprep.subr.mxu0 0.0
    %1180 = vmatpush1.msra.mxu0 0.0
    %1181 = vmatprep.subr.mxu0 %v1169
    %1182 = vmatpush1.msra.mxu0 %v1168
    %1183 = vmatprep.subr.mxu0 %v1167
    %1184 = vmatpush1.msra.mxu0 %v1166
    %1185 = vmatprep.subr.mxu0 %v1165
    %1186 = vmatpush1.msra.mxu0 %v1164
    %1187 = vmatprep.subr.mxu0 %v1163
    %1188 = vmatpush1.msra.mxu0 %v1162
    %1189 = vmatprep.subr.mxu0 %v1161
    %1190 = vmatpush1.msra.mxu0 %v1160
    %1191 = vmatprep.subr.mxu0 %v1159
    %1192 = vmatpush1.msra.mxu0 %v1158
    %1193 = vmatprep.subr.mxu0 %v1157
    %1194 = vmatpush1.msra.mxu0 %v1156
    %1195 = vmatprep.subr.mxu0 %v1155
    %1196 = vmatpush1.msra.mxu0 %v1154
    %1197 = vmatprep.subr.mxu0 %v1153
    %1198 = vmatpush1.msra.mxu0 %v1152
    %1199 = vmatprep.subr.mxu0 %v1151
    %1200 = vmatpush1.msra.mxu0 %v1150
    %1201 = vmatprep.subr.mxu0 %v1149
    %1202 = vmatpush1.msra.mxu0 %v1148
    %1203 = vmatprep.subr.mxu0 %v1147
    %1204 = vmatpush1.msra.mxu0 %v1146
    %1205 = vmatprep.subr.mxu0 0.0
    %1206 = vmatpush2.msra.mxu0 0.0
    %1207 = vmatprep.subr.mxu0 0.0
    %1208 = vmatpush2.msra.mxu0 0.0
    %1209 = vmatprep.subr.mxu0 0.0
    %1210 = vmatpush2.msra.mxu0 0.0
    %1211 = vmatprep.subr.mxu0 0.0
    %1212 = vmatpush2.msra.mxu0 0.0
    %1213 = vmatprep.subr.mxu0 0.0
    %1214 = vmatpush2.msra.mxu0 0.0
    %1215 = vmatprep.subr.mxu0 0.0
    %1216 = vmatpush2.msra.mxu0 0.0
    %1217 = vmatprep.subr.mxu0 0.0
    %1218 = vmatpush2.msra.mxu0 0.0
    %1219 = vmatprep.subr.mxu0 0.0
    %1220 = vmatpush2.msra.mxu0 0.0
    %1221 = vmatprep.subr.mxu0 0.0
    %1222 = vmatpush2.msra.mxu0 0.0
    %1223 = vmatprep.subr.mxu0 0.0
    %1224 = vmatpush2.msra.mxu0 0.0
    %1225 = vmatprep.subr.mxu0 0.0
    %1226 = vmatpush2.msra.mxu0 0.0
    %1227 = vmatprep.subr.mxu0 0.0
    %1228 = vmatpush2.msra.mxu0 0.0
    %1229 = vmatprep.subr.mxu0 0.0
    %1230 = vmatpush2.msra.mxu0 0.0
    %1231 = vmatprep.subr.mxu0 0.0
    %1232 = vmatpush2.msra.mxu0 0.0
    %1233 = vmatprep.subr.mxu0 0.0
    %1234 = vmatpush2.msra.mxu0 0.0
    %1235 = vmatprep.subr.mxu0 0.0
    %1236 = vmatpush2.msra.mxu0 0.0
    %1237 = vmatprep.mubr.f32.mxu0 0.0
    %1238 = vmatmul.mubr.f32.gmra.mxu0 %v1171
    %v1239 = vpop.f32.mrf.mxu0
    %v1240 = vadd.f32 0.0, %v1239
    %v1241 = vpop.f32.mrf.mxu0
    %v1242 = vadd.f32 0.0, %v1241
    %1243 = vdwg.mxu0
    %v1244 = vadd.f32 %v1142, %v1240
    %v1245 = vadd.f32 %v1144, %v1242
    %v1246 = vld [vmem:[%s12] sm:$0x3]
    %v1248 = vlaneseq
    %v1249 = vshrl.u32 %v1248, 7
    %v1250 = vsub.s32 0, %v1249
    %v1251 = vrot.slane %v1246, %v1250
    %v1252 = vlaneseq
    %v1253 = vshrl.u32 %v1252, 7
    %v1254 = vsub.s32 1, %v1253
    %v1255 = vrot.slane %v1246, %v1254
    %v1258 = vadd.f32 %v1244, %v1251
    %v1259 = vadd.f32 %v1245, %v1255
    %v1260 = vmax.f32 %v1258, 0.0
    %v1261 = vmax.f32 %v1259, 0.0
    %v1262 = vld [vmem:[%s13] sm:$0xff]
    %v1263 = vld [vmem:[%s13 + $0x8] sm:$0xff]
    %v1264 = vld [vmem:[%s13 + $0x10] sm:$0xff]
    %v1265 = vld [vmem:[%s13 + $0x18] sm:$0xff]
    %v1266 = vld [vmem:[%s13 + $0x20] sm:$0xff]
    %v1267 = vld [vmem:[%s13 + $0x28] sm:$0xff]
    %v1268 = vld [vmem:[%s13 + $0x30] sm:$0xff]
    %v1269 = vld [vmem:[%s13 + $0x38] sm:$0xff]
    %v1270 = vld [vmem:[%s13 + $0x40] sm:$0xff]
    %v1271 = vld [vmem:[%s13 + $0x48] sm:$0xff]
    %v1272 = vld [vmem:[%s13 + $0x50] sm:$0xff]
    %v1273 = vld [vmem:[%s13 + $0x58] sm:$0xff]
    %v1274 = vld [vmem:[%s13 + $0x60] sm:$0xff]
    %v1275 = vld [vmem:[%s13 + $0x68] sm:$0xff]
    %v1276 = vld [vmem:[%s13 + $0x70] sm:$0xff]
    %v1277 = vld [vmem:[%s13 + $0x78] sm:$0xff]
    %v1278 = vld [vmem:[%s13 + $0x80] sm:$0xff]
    %v1279 = vld [vmem:[%s13 + $0x88] sm:$0xff]
    %v1280 = vld [vmem:[%s13 + $0x90] sm:$0xff]
    %v1281 = vld [vmem:[%s13 + $0x98] sm:$0xff]
    %v1282 = vld [vmem:[%s13 + $0xa0] sm:$0xff]
    %v1283 = vld [vmem:[%s13 + $0xa8] sm:$0xff]
    %v1284 = vld [vmem:[%s13 + $0xb0] sm:$0xff]
    %v1285 = vld [vmem:[%s13 + $0xb8] sm:$0xff]
    %v1286 = vld [vmem:[%s13 + $0xc0] sm:$0xff]
    %v1287 = vld [vmem:[%s13 + $0xc8] sm:$0xff]
    %v1288 = vld [vmem:[%s13 + $0xd0] sm:$0xff]
    %v1289 = vld [vmem:[%s13 + $0xd8] sm:$0xff]
    %v1290 = vld [vmem:[%s13 + $0xe0] sm:$0xff]
    %v1291 = vld [vmem:[%s13 + $0xe8] sm:$0xff]
    %v1292 = vld [vmem:[%s13 + $0xf0] sm:$0xff]
    %v1293 = vld [vmem:[%s13 + $0xf8] sm:$0xff]
    %v1294 = vld [vmem:[%s14] sm:$0x1]
    %v1296 = vlaneseq
    %v1297 = vshrl.u32 %v1296, 7
    %v1298 = vsub.s32 0, %v1297
    %v1299 = vrot.slane %v1294, %v1298
    %1301 = vmatprep.subr.mxu0 0.0
    %1302 = vmatpush1.msra.mxu0 %v1277
    %1303 = vmatprep.subr.mxu0 0.0
    %1304 = vmatpush1.msra.mxu0 %v1276
    %1305 = vmatprep.subr.mxu0 0.0
    %1306 = vmatpush1.msra.mxu0 %v1275
    %1307 = vmatprep.subr.mxu0 0.0
    %1308 = vmatpush1.msra.mxu0 %v1274
    %1309 = vmatprep.subr.mxu0 0.0
    %1310 = vmatpush1.msra.mxu0 %v1273
    %1311 = vmatprep.subr.mxu0 0.0
    %1312 = vmatpush1.msra.mxu0 %v1272
    %1313 = vmatprep.subr.mxu0 0.0
    %1314 = vmatpush1.msra.mxu0 %v1271
    %1315 = vmatprep.subr.mxu0 0.0
    %1316 = vmatpush1.msra.mxu0 %v1270
    %1317 = vmatprep.subr.mxu0 0.0
    %1318 = vmatpush1.msra.mxu0 %v1269
    %1319 = vmatprep.subr.mxu0 0.0
    %1320 = vmatpush1.msra.mxu0 %v1268
    %1321 = vmatprep.subr.mxu0 0.0
    %1322 = vmatpush1.msra.mxu0 %v1267
    %1323 = vmatprep.subr.mxu0 0.0
    %1324 = vmatpush1.msra.mxu0 %v1266
    %1325 = vmatprep.subr.mxu0 0.0
    %1326 = vmatpush1.msra.mxu0 %v1265
    %1327 = vmatprep.subr.mxu0 0.0
    %1328 = vmatpush1.msra.mxu0 %v1264
    %1329 = vmatprep.subr.mxu0 0.0
    %1330 = vmatpush1.msra.mxu0 %v1263
    %1331 = vmatprep.subr.mxu0 0.0
    %1332 = vmatpush1.msra.mxu0 %v1262
    %1333 = vmatprep.subr.mxu0 0.0
    %1334 = vmatpush2.msra.mxu0 %v1293
    %1335 = vmatprep.subr.mxu0 0.0
    %1336 = vmatpush2.msra.mxu0 %v1292
    %1337 = vmatprep.subr.mxu0 0.0
    %1338 = vmatpush2.msra.mxu0 %v1291
    %1339 = vmatprep.subr.mxu0 0.0
    %1340 = vmatpush2.msra.mxu0 %v1290
    %1341 = vmatprep.subr.mxu0 0.0
    %1342 = vmatpush2.msra.mxu0 %v1289
    %1343 = vmatprep.subr.mxu0 0.0
    %1344 = vmatpush2.msra.mxu0 %v1288
    %1345 = vmatprep.subr.mxu0 0.0
    %1346 = vmatpush2.msra.mxu0 %v1287
    %1347 = vmatprep.subr.mxu0 0.0
    %1348 = vmatpush2.msra.mxu0 %v1286
    %1349 = vmatprep.subr.mxu0 0.0
    %1350 = vmatpush2.msra.mxu0 %v1285
    %1351 = vmatprep.subr.mxu0 0.0
    %1352 = vmatpush2.msra.mxu0 %v1284
    %1353 = vmatprep.subr.mxu0 0.0
    %1354 = vmatpush2.msra.mxu0 %v1283
    %1355 = vmatprep.subr.mxu0 0.0
    %1356 = vmatpush2.msra.mxu0 %v1282
    %1357 = vmatprep.subr.mxu0 0.0
    %1358 = vmatpush2.msra.mxu0 %v1281
    %1359 = vmatprep.subr.mxu0 0.0
    %1360 = vmatpush2.msra.mxu0 %v1280
    %1361 = vmatprep.subr.mxu0 0.0
    %1362 = vmatpush2.msra.mxu0 %v1279
    %1363 = vmatprep.subr.mxu0 0.0
    %1364 = vmatpush2.msra.mxu0 %v1278
    %1365 = vmatprep.mubr.f32.mxu0 %v1261
    %1366 = vmatmul.mubr.f32.gmra.mxu0 %v1260
    %v1367 = vpop.f32.mrf.mxu0
    %v1368 = vadd.f32 %v1299, %v1367
    %v1369 = vpop.f32.mrf.mxu0
    %1370 = vdwg.mxu0
    %vm1371 = vcmask 82944
    %1372 = vst.msk [vmem:[#allocation4] sm:$0x3] %vm1371, %v1368
    // Predicated region
    $region62: #{classifier2d_forward.1} parent=1 // pred_check
      _
    $region63: #{classifier2d_forward.1} parent=1 // pred_check_branch
      %1374 = sbr.rel (0) target = $region65
    $region64: #{classifier2d_forward.1} parent=1 // pred_region
      %s1376 = ssub.s32 32, 32
      %1377 = vsyncadd [#allocation5], %s1376
      %s1379 = sshll.u32 [#allocation4], 4
      %s1380 = int_to_ptr.vmem [resolvable:$true] %s1379
      %1382 = dma.vmem_to_hbm [thread:$0]  %s1380, 32, %s15, [#allocation5]
    $region65: #{classifier2d_forward.1} parent=1 // pred_fallthru
      _
    // Predicated region
    $region66: #{classifier2d_forward.1} parent=1 // pred_check
      _
    $region67: #{classifier2d_forward.1} parent=1 // pred_check_branch
      %1384 = sbr.rel (0) target = $region69
    $region68: #{classifier2d_forward.1} parent=1 // pred_region
      %1385 = dma.done [#allocation5], 32
    $region69: #{classifier2d_forward.1} parent=1 // pred_fallthru
      _
    %1386 = vsyncpa [#allocation5], 1

</llo_original>
